<compile_context>
chip_gen: v5e
topology: v5e:2x2
jax: 0.10.0
libtpu: 0.0.40
codegen_flags: <defaults>
</compile_context>

<pallas_src>
import math

import jax
import jax.numpy as jnp
from jax.experimental import pallas as pl
from jax.experimental.pallas import tpu as pltpu

INPUT_SIZE = 3
EMBEDDING_DIM = 5
LSTM_HIDDEN_UNITS = 20
NUM_TAGS = 2

GATE_PITCH = 128                 # each LSTM gate padded to its own 128-lane column
GATES_WIDTH = 4 * GATE_PITCH     # 512

# ---- packed weight-slab row layout (one DMA for every parameter) ----
ROW_W_EMB = 0      # rows [0:3),   cols [0:E)
ROW_B_EMB = 8      # row  8,       cols [0:E)
ROW_B_LSTM = 9     # row  9,       cols [0:512)  (b_ih+b_hh, prescaled, gate-padded)
ROW_B_OUT = 10     # row  10,      cols [0:NUM_TAGS)
ROW_W_IH = 16      # rows [16:21), cols [0:512)  (prescaled, gate-padded)
ROW_W_HH = 24      # rows [24:44), cols [0:512)  (prescaled, gate-padded)
ROW_W_OUT = 48     # rows [48:68), cols [0:NUM_TAGS)
SLAB_ROWS = 72     # 72 x 512 f32 = 144 KiB


def mymodule_kernel(x_ref,      # (B*S, INPUT_SIZE) batch-major (row index b*S + t)
                    slab_ref,   # (SLAB_ROWS, GATES_WIDTH) packed params
                    out_ref):   # (B, NUM_TAGS)
    E, H, GP = EMBEDDING_DIM, LSTM_HIDDEN_UNITS, GATE_PITCH
    B = out_ref.shape[0]
    S = x_ref.shape[0] // B

    # --- unpack the single slab with static slices; everything read up-front ---
    w_emb = slab_ref[ROW_W_EMB:ROW_W_EMB + INPUT_SIZE, 0:E]        # (3, E)
    b_emb = slab_ref[ROW_B_EMB:ROW_B_EMB + 1, 0:E]                 # (1, E)
    b_g = slab_ref[ROW_B_LSTM:ROW_B_LSTM + 1, :]                   # (1, 4*GP)
    b_out = slab_ref[ROW_B_OUT:ROW_B_OUT + 1, 0:NUM_TAGS]          # (1, NUM_TAGS)
    w_ih = slab_ref[ROW_W_IH:ROW_W_IH + E, :]                      # (E, 4*GP)
    w_hh = slab_ref[ROW_W_HH:ROW_W_HH + H, :]                      # (H, 4*GP)
    w_out = slab_ref[ROW_W_OUT:ROW_W_OUT + H, 0:NUM_TAGS]          # (H, NUM_TAGS)

    # --- embedding + x-part of the gates for every (b, t) row at once (MXU) ---
    emb = jnp.tanh(
        jnp.dot(x_ref[...], w_emb, preferred_element_type=jnp.float32) + b_emb)
    gx = jnp.dot(emb, w_ih, preferred_element_type=jnp.float32) + b_g  # (B*S, 4*GP)

    # --- fully-unrolled sequential LSTM recurrence ---
    # gx gathers / slices below do not depend on (h, c), so the scheduler can
    # overlap them with the serial chain.
    h = jnp.zeros((B, H), jnp.float32)
    c = jnp.zeros((B, H), jnp.float32)
    for t in range(S):
        # gather the timestep-t rows (batch-major row b*S + t) -> (B, 4*GP)
        gx_t = jnp.concatenate(
            [gx[b * S + t:b * S + t + 1, :] for b in range(B)], axis=0)
        gates = gx_t + jnp.dot(h, w_hh, preferred_element_type=jnp.float32)
        # ONE EUP push: tanh over all four (prescaled) gate columns at once.
        tg = jnp.tanh(gates)
        # sigmoid(z) == 0.5*tanh(0.5*z) + 0.5; the 0.5 prescale is baked into the
        # i/f/o columns of w_ih / w_hh / b at pack time. g column is unscaled.
        i = 0.5 * tg[:, 0 * GP:0 * GP + H] + 0.5
        f = 0.5 * tg[:, 1 * GP:1 * GP + H] + 0.5
        g = tg[:, 2 * GP:2 * GP + H]
        o = 0.5 * tg[:, 3 * GP:3 * GP + H] + 0.5
        c = f * c + i * g
        h = o * jnp.tanh(c)

    # --- hidden_to_tag on the last hidden state ---
    out_ref[...] = jnp.dot(h, w_out, preferred_element_type=jnp.float32) + b_out


def pack_params(params):
    """One-time parameter transform:
       * fold the 0.5 sigmoid prescale into i/f/o columns of w_ih, w_hh, bias
       * pad each gate to its own 128-lane column (zero fill)
       * pack all 7 arrays into one (SLAB_ROWS, 512) f32 slab (single DMA)."""
    E, H, GP = EMBEDDING_DIM, LSTM_HIDDEN_UNITS, GATE_PITCH
    scale = jnp.concatenate([jnp.full((H,), 0.5, jnp.float32),
                             jnp.full((H,), 0.5, jnp.float32),
                             jnp.full((H,), 1.0, jnp.float32),
                             jnp.full((H,), 0.5, jnp.float32)])

    def gate_pad(w):  # (..., 4H) -> (..., 4*GP); gate k at lanes [k*GP, k*GP+H)
        pads = [(0, 0)] * (w.ndim - 1) + [(0, GP - H)]
        return jnp.concatenate(
            [jnp.pad(w[..., k * H:(k + 1) * H], pads) for k in range(4)], axis=-1)

    w_ih = gate_pad(params["w_ih"].astype(jnp.float32) * scale[None, :])
    w_hh = gate_pad(params["w_hh"].astype(jnp.float32) * scale[None, :])
    b_lstm = gate_pad(((params["b_ih"] + params["b_hh"]) * scale)[None, :])

    slab = jnp.zeros((SLAB_ROWS, GATES_WIDTH), jnp.float32)
    slab = slab.at[ROW_W_EMB:ROW_W_EMB + INPUT_SIZE, 0:E].set(params["w_emb"])
    slab = slab.at[ROW_B_EMB, 0:E].set(params["b_emb"])
    slab = slab.at[ROW_B_LSTM:ROW_B_LSTM + 1, :].set(b_lstm)
    slab = slab.at[ROW_B_OUT, 0:NUM_TAGS].set(params["b_out"])
    slab = slab.at[ROW_W_IH:ROW_W_IH + E, :].set(w_ih)
    slab = slab.at[ROW_W_HH:ROW_W_HH + H, :].set(w_hh)
    slab = slab.at[ROW_W_OUT:ROW_W_OUT + H, 0:NUM_TAGS].set(params["w_out"])
    return slab


def mymodule_forward(x_bsd, slab):
    """x_bsd: (B, S, INPUT_SIZE) batch-first, like the PyTorch module.
       slab:  output of pack_params (build once, reuse across calls)."""
    B, S, D = x_bsd.shape
    H, E = LSTM_HIDDEN_UNITS, EMBEDDING_DIM
    # Contiguous (B,S,D)->(B*S,D) reshape is genuinely free (no transpose kernel).
    x_flat = x_bsd.reshape(B * S, D).astype(jnp.float32)

    flops = (2 * B * S * D * E
             + 2 * B * S * E * GATES_WIDTH
             + 2 * S * B * H * GATES_WIDTH
             + 10 * S * B * H
             + 2 * B * H * NUM_TAGS)
    transcendentals = B * S * E + S * B * 5 * H
    bytes_accessed = (x_flat.size + slab.size + B * NUM_TAGS) * 4

    vmem = pl.BlockSpec(memory_space=pltpu.MemorySpace.VMEM)
    return pl.pallas_call(
        mymodule_kernel,
        out_shape=jax.ShapeDtypeStruct((B, NUM_TAGS), jnp.float32),
        in_specs=[vmem, vmem],
        out_specs=vmem,
        cost_estimate=pl.CostEstimate(flops=flops,
                                      transcendentals=transcendentals,
                                      bytes_accessed=bytes_accessed),
    )(x_flat, slab)


def reference_forward(x_bsd, params):
    """Pure-JAX reference matching torch.nn.LSTM semantics (gate order i,f,g,o)."""
    B, S, _ = x_bsd.shape
    H = params["w_hh"].shape[0]
    emb = jnp.tanh(x_bsd @ params["w_emb"] + params["b_emb"])

    def step(carry, x_t):
        h, c = carry
        gates = (x_t @ params["w_ih"] + params["b_ih"]
                 + h @ params["w_hh"] + params["b_hh"])
        i, f, g, o = jnp.split(gates, 4, axis=-1)
        i, f, o = jax.nn.sigmoid(i), jax.nn.sigmoid(f), jax.nn.sigmoid(o)
        g = jnp.tanh(g)
        c = f * c + i * g
        h = o * jnp.tanh(c)
        return (h, c), None

    h0 = jnp.zeros((B, H), jnp.float32)
    c0 = jnp.zeros((B, H), jnp.float32)
    (h_last, _), _ = jax.lax.scan(step, (h0, c0), jnp.transpose(emb, (1, 0, 2)))
    return h_last @ params["w_out"] + params["b_out"]


def init_params(key, input_size=INPUT_SIZE, e=EMBEDDING_DIM, h=LSTM_HIDDEN_UNITS,
                n_tags=NUM_TAGS):
    ks = jax.random.split(key, 8)

    def u(k, shape, bound):
        return jax.random.uniform(k, shape, jnp.float32, -bound, bound)

    k_emb = 1.0 / math.sqrt(input_size)   # nn.Linear default init bound
    k_lstm = 1.0 / math.sqrt(h)           # nn.LSTM default init bound
    k_out = 1.0 / math.sqrt(h)            # nn.Linear default init bound
    return {
        # stored already transposed: (in_features, out_features)
        "w_emb": u(ks[0], (input_size, e), k_emb),
        "b_emb": u(ks[1], (e,), k_emb),
        "w_ih":  u(ks[2], (e, 4 * h), k_lstm),
        "w_hh":  u(ks[3], (h, 4 * h), k_lstm),
        "b_ih":  u(ks[4], (4 * h,), k_lstm),
        "b_hh":  u(ks[5], (4 * h,), k_lstm),
        "w_out": u(ks[6], (h, n_tags), k_out),
        "b_out": u(ks[7], (n_tags,), k_out),
    }


if __name__ == "__main__":
    key = jax.random.PRNGKey(0)
    k_params, k_x = jax.random.split(key)

    B, S = 2, 8
    params = init_params(k_params)
    slab = pack_params(params)          # one-time packing; reuse across calls
    x = jax.random.normal(k_x, (B, S, INPUT_SIZE), jnp.float32)

    out = jax.block_until_ready(mymodule_forward(x, slab))

    ref = reference_forward(x, params)
    assert out.shape == (B, NUM_TAGS)
    assert jnp.allclose(out, ref, atol=1e-5, rtol=1e-5), (out, ref)

    print("KERNEL_OK")
</pallas_src>

<mosaic_0001>
module attributes {stable_mosaic.version = 11 : i64} {
  func.func @mymodule_kernel(%arg0: memref<16x3xf32, #tpu.memory_space<vmem>>, %arg1: memref<72x512xf32, #tpu.memory_space<vmem>>, %arg2: memref<2x2xf32, #tpu.memory_space<vmem>>) attributes {dimension_semantics = [], scalar_prefetch = 0 : i64, scratch_operands = 0 : i64, tpu.core_type = #tpu.core_type<tc>} {
    %c0 = arith.constant 0 : index
    %c0_0 = arith.constant 0 : index
    %0 = vector.load %arg1[%c0, %c0_0] : memref<72x512xf32, #tpu.memory_space<vmem>>, vector<3x5xf32>
    %c8 = arith.constant 8 : index
    %c0_1 = arith.constant 0 : index
    %1 = vector.load %arg1[%c8, %c0_1] : memref<72x512xf32, #tpu.memory_space<vmem>>, vector<1x5xf32>
    %c9 = arith.constant 9 : index
    %c0_2 = arith.constant 0 : index
    %2 = vector.load %arg1[%c9, %c0_2] : memref<72x512xf32, #tpu.memory_space<vmem>>, vector<1x512xf32>
    %c10 = arith.constant 10 : index
    %c0_3 = arith.constant 0 : index
    %3 = vector.load %arg1[%c10, %c0_3] : memref<72x512xf32, #tpu.memory_space<vmem>>, vector<1x2xf32>
    %c16 = arith.constant 16 : index
    %c0_4 = arith.constant 0 : index
    %4 = vector.load %arg1[%c16, %c0_4] : memref<72x512xf32, #tpu.memory_space<vmem>>, vector<5x512xf32>
    %c24 = arith.constant 24 : index
    %c0_5 = arith.constant 0 : index
    %5 = vector.load %arg1[%c24, %c0_5] : memref<72x512xf32, #tpu.memory_space<vmem>>, vector<20x512xf32>
    %c48 = arith.constant 48 : index
    %c0_6 = arith.constant 0 : index
    %6 = vector.load %arg1[%c48, %c0_6] : memref<72x512xf32, #tpu.memory_space<vmem>>, vector<20x2xf32>
    %c0_7 = arith.constant 0 : index
    %c0_8 = arith.constant 0 : index
    %7 = vector.load %arg0[%c0_7, %c0_8] : memref<16x3xf32, #tpu.memory_space<vmem>>, vector<16x3xf32>
    %cst = arith.constant dense<0.000000e+00> : vector<16x5xf32>
    %8 = tpu.matmul %7, %0, %cst {dimension_numbers = #tpu.dot_dimension_numbers<[1], [0], [0], [1], [0, 0, 1, 1], [], []>} : vector<16x3xf32>, vector<3x5xf32>, vector<16x5xf32> -> vector<16x5xf32>
    %9 = vector.broadcast %1 : vector<1x5xf32> to vector<16x5xf32>
    %10 = arith.addf %8, %9 : vector<16x5xf32>
    %11 = math.tanh %10 : vector<16x5xf32>
    %cst_9 = arith.constant dense<0.000000e+00> : vector<16x512xf32>
    %12 = tpu.matmul %11, %4, %cst_9 {dimension_numbers = #tpu.dot_dimension_numbers<[1], [0], [0], [1], [0, 0, 1, 1], [], []>} : vector<16x5xf32>, vector<5x512xf32>, vector<16x512xf32> -> vector<16x512xf32>
    %13 = vector.broadcast %2 : vector<1x512xf32> to vector<16x512xf32>
    %14 = arith.addf %12, %13 : vector<16x512xf32>
    %cst_10 = arith.constant 0.000000e+00 : f32
    %15 = vector.broadcast %cst_10 : f32 to vector<2x20xf32>
    %cst_11 = arith.constant 0.000000e+00 : f32
    %16 = vector.broadcast %cst_11 : f32 to vector<2x20xf32>
    %17 = vector.extract_strided_slice %14 {offsets = [0, 0], sizes = [1, 512], strides = [1, 1]} : vector<16x512xf32> to vector<1x512xf32>
    %18 = vector.extract_strided_slice %14 {offsets = [8, 0], sizes = [1, 512], strides = [1, 1]} : vector<16x512xf32> to vector<1x512xf32>
    %19 = tpu.concatenate %17, %18 in 0 : vector<1x512xf32>, vector<1x512xf32> -> vector<2x512xf32>
    %cst_12 = arith.constant dense<0.000000e+00> : vector<2x512xf32>
    %20 = tpu.matmul %15, %5, %cst_12 {dimension_numbers = #tpu.dot_dimension_numbers<[1], [0], [0], [1], [0, 0, 1, 1], [], []>} : vector<2x20xf32>, vector<20x512xf32>, vector<2x512xf32> -> vector<2x512xf32>
    %21 = arith.addf %19, %20 : vector<2x512xf32>
    %22 = math.tanh %21 : vector<2x512xf32>
    %23 = vector.extract_strided_slice %22 {offsets = [0, 0], sizes = [2, 20], strides = [1, 1]} : vector<2x512xf32> to vector<2x20xf32>
    %cst_13 = arith.constant 5.000000e-01 : f32
    %24 = vector.broadcast %cst_13 : f32 to vector<2x20xf32>
    %25 = arith.mulf %24, %23 : vector<2x20xf32>
    %cst_14 = arith.constant 5.000000e-01 : f32
    %26 = vector.broadcast %cst_14 : f32 to vector<2x20xf32>
    %27 = arith.addf %25, %26 : vector<2x20xf32>
    %28 = vector.extract_strided_slice %22 {offsets = [0, 128], sizes = [2, 20], strides = [1, 1]} : vector<2x512xf32> to vector<2x20xf32>
    %cst_15 = arith.constant 5.000000e-01 : f32
    %29 = vector.broadcast %cst_15 : f32 to vector<2x20xf32>
    %30 = arith.mulf %29, %28 : vector<2x20xf32>
    %cst_16 = arith.constant 5.000000e-01 : f32
    %31 = vector.broadcast %cst_16 : f32 to vector<2x20xf32>
    %32 = arith.addf %30, %31 : vector<2x20xf32>
    %33 = vector.extract_strided_slice %22 {offsets = [0, 256], sizes = [2, 20], strides = [1, 1]} : vector<2x512xf32> to vector<2x20xf32>
    %34 = vector.extract_strided_slice %22 {offsets = [0, 384], sizes = [2, 20], strides = [1, 1]} : vector<2x512xf32> to vector<2x20xf32>
    %cst_17 = arith.constant 5.000000e-01 : f32
    %35 = vector.broadcast %cst_17 : f32 to vector<2x20xf32>
    %36 = arith.mulf %35, %34 : vector<2x20xf32>
    %cst_18 = arith.constant 5.000000e-01 : f32
    %37 = vector.broadcast %cst_18 : f32 to vector<2x20xf32>
    %38 = arith.addf %36, %37 : vector<2x20xf32>
    %39 = arith.mulf %32, %16 : vector<2x20xf32>
    %40 = arith.mulf %27, %33 : vector<2x20xf32>
    %41 = arith.addf %39, %40 : vector<2x20xf32>
    %42 = math.tanh %41 : vector<2x20xf32>
    %43 = arith.mulf %38, %42 : vector<2x20xf32>
    %44 = vector.extract_strided_slice %14 {offsets = [1, 0], sizes = [1, 512], strides = [1, 1]} : vector<16x512xf32> to vector<1x512xf32>
    %45 = vector.extract_strided_slice %14 {offsets = [9, 0], sizes = [1, 512], strides = [1, 1]} : vector<16x512xf32> to vector<1x512xf32>
    %46 = tpu.concatenate %44, %45 in 0 : vector<1x512xf32>, vector<1x512xf32> -> vector<2x512xf32>
    %cst_19 = arith.constant dense<0.000000e+00> : vector<2x512xf32>
    %47 = tpu.matmul %43, %5, %cst_19 {dimension_numbers = #tpu.dot_dimension_numbers<[1], [0], [0], [1], [0, 0, 1, 1], [], []>} : vector<2x20xf32>, vector<20x512xf32>, vector<2x512xf32> -> vector<2x512xf32>
    %48 = arith.addf %46, %47 : vector<2x512xf32>
    %49 = math.tanh %48 : vector<2x512xf32>
    %50 = vector.extract_strided_slice %49 {offsets = [0, 0], sizes = [2, 20], strides = [1, 1]} : vector<2x512xf32> to vector<2x20xf32>
    %cst_20 = arith.constant 5.000000e-01 : f32
    %51 = vector.broadcast %cst_20 : f32 to vector<2x20xf32>
    %52 = arith.mulf %51, %50 : vector<2x20xf32>
    %cst_21 = arith.constant 5.000000e-01 : f32
    %53 = vector.broadcast %cst_21 : f32 to vector<2x20xf32>
    %54 = arith.addf %52, %53 : vector<2x20xf32>
    %55 = vector.extract_strided_slice %49 {offsets = [0, 128], sizes = [2, 20], strides = [1, 1]} : vector<2x512xf32> to vector<2x20xf32>
    %cst_22 = arith.constant 5.000000e-01 : f32
    %56 = vector.broadcast %cst_22 : f32 to vector<2x20xf32>
    %57 = arith.mulf %56, %55 : vector<2x20xf32>
    %cst_23 = arith.constant 5.000000e-01 : f32
    %58 = vector.broadcast %cst_23 : f32 to vector<2x20xf32>
    %59 = arith.addf %57, %58 : vector<2x20xf32>
    %60 = vector.extract_strided_slice %49 {offsets = [0, 256], sizes = [2, 20], strides = [1, 1]} : vector<2x512xf32> to vector<2x20xf32>
    %61 = vector.extract_strided_slice %49 {offsets = [0, 384], sizes = [2, 20], strides = [1, 1]} : vector<2x512xf32> to vector<2x20xf32>
    %cst_24 = arith.constant 5.000000e-01 : f32
    %62 = vector.broadcast %cst_24 : f32 to vector<2x20xf32>
    %63 = arith.mulf %62, %61 : vector<2x20xf32>
    %cst_25 = arith.constant 5.000000e-01 : f32
    %64 = vector.broadcast %cst_25 : f32 to vector<2x20xf32>
    %65 = arith.addf %63, %64 : vector<2x20xf32>
    %66 = arith.mulf %59, %41 : vector<2x20xf32>
    %67 = arith.mulf %54, %60 : vector<2x20xf32>
    %68 = arith.addf %66, %67 : vector<2x20xf32>
    %69 = math.tanh %68 : vector<2x20xf32>
    %70 = arith.mulf %65, %69 : vector<2x20xf32>
    %71 = vector.extract_strided_slice %14 {offsets = [2, 0], sizes = [1, 512], strides = [1, 1]} : vector<16x512xf32> to vector<1x512xf32>
    %72 = vector.extract_strided_slice %14 {offsets = [10, 0], sizes = [1, 512], strides = [1, 1]} : vector<16x512xf32> to vector<1x512xf32>
    %73 = tpu.concatenate %71, %72 in 0 : vector<1x512xf32>, vector<1x512xf32> -> vector<2x512xf32>
    %cst_26 = arith.constant dense<0.000000e+00> : vector<2x512xf32>
    %74 = tpu.matmul %70, %5, %cst_26 {dimension_numbers = #tpu.dot_dimension_numbers<[1], [0], [0], [1], [0, 0, 1, 1], [], []>} : vector<2x20xf32>, vector<20x512xf32>, vector<2x512xf32> -> vector<2x512xf32>
    %75 = arith.addf %73, %74 : vector<2x512xf32>
    %76 = math.tanh %75 : vector<2x512xf32>
    %77 = vector.extract_strided_slice %76 {offsets = [0, 0], sizes = [2, 20], strides = [1, 1]} : vector<2x512xf32> to vector<2x20xf32>
    %cst_27 = arith.constant 5.000000e-01 : f32
    %78 = vector.broadcast %cst_27 : f32 to vector<2x20xf32>
    %79 = arith.mulf %78, %77 : vector<2x20xf32>
    %cst_28 = arith.constant 5.000000e-01 : f32
    %80 = vector.broadcast %cst_28 : f32 to vector<2x20xf32>
    %81 = arith.addf %79, %80 : vector<2x20xf32>
    %82 = vector.extract_strided_slice %76 {offsets = [0, 128], sizes = [2, 20], strides = [1, 1]} : vector<2x512xf32> to vector<2x20xf32>
    %cst_29 = arith.constant 5.000000e-01 : f32
    %83 = vector.broadcast %cst_29 : f32 to vector<2x20xf32>
    %84 = arith.mulf %83, %82 : vector<2x20xf32>
    %cst_30 = arith.constant 5.000000e-01 : f32
    %85 = vector.broadcast %cst_30 : f32 to vector<2x20xf32>
    %86 = arith.addf %84, %85 : vector<2x20xf32>
    %87 = vector.extract_strided_slice %76 {offsets = [0, 256], sizes = [2, 20], strides = [1, 1]} : vector<2x512xf32> to vector<2x20xf32>
    %88 = vector.extract_strided_slice %76 {offsets = [0, 384], sizes = [2, 20], strides = [1, 1]} : vector<2x512xf32> to vector<2x20xf32>
    %cst_31 = arith.constant 5.000000e-01 : f32
    %89 = vector.broadcast %cst_31 : f32 to vector<2x20xf32>
    %90 = arith.mulf %89, %88 : vector<2x20xf32>
    %cst_32 = arith.constant 5.000000e-01 : f32
    %91 = vector.broadcast %cst_32 : f32 to vector<2x20xf32>
    %92 = arith.addf %90, %91 : vector<2x20xf32>
    %93 = arith.mulf %86, %68 : vector<2x20xf32>
    %94 = arith.mulf %81, %87 : vector<2x20xf32>
    %95 = arith.addf %93, %94 : vector<2x20xf32>
    %96 = math.tanh %95 : vector<2x20xf32>
    %97 = arith.mulf %92, %96 : vector<2x20xf32>
    %98 = vector.extract_strided_slice %14 {offsets = [3, 0], sizes = [1, 512], strides = [1, 1]} : vector<16x512xf32> to vector<1x512xf32>
    %99 = vector.extract_strided_slice %14 {offsets = [11, 0], sizes = [1, 512], strides = [1, 1]} : vector<16x512xf32> to vector<1x512xf32>
    %100 = tpu.concatenate %98, %99 in 0 : vector<1x512xf32>, vector<1x512xf32> -> vector<2x512xf32>
    %cst_33 = arith.constant dense<0.000000e+00> : vector<2x512xf32>
    %101 = tpu.matmul %97, %5, %cst_33 {dimension_numbers = #tpu.dot_dimension_numbers<[1], [0], [0], [1], [0, 0, 1, 1], [], []>} : vector<2x20xf32>, vector<20x512xf32>, vector<2x512xf32> -> vector<2x512xf32>
    %102 = arith.addf %100, %101 : vector<2x512xf32>
    %103 = math.tanh %102 : vector<2x512xf32>
    %104 = vector.extract_strided_slice %103 {offsets = [0, 0], sizes = [2, 20], strides = [1, 1]} : vector<2x512xf32> to vector<2x20xf32>
    %cst_34 = arith.constant 5.000000e-01 : f32
    %105 = vector.broadcast %cst_34 : f32 to vector<2x20xf32>
    %106 = arith.mulf %105, %104 : vector<2x20xf32>
    %cst_35 = arith.constant 5.000000e-01 : f32
    %107 = vector.broadcast %cst_35 : f32 to vector<2x20xf32>
    %108 = arith.addf %106, %107 : vector<2x20xf32>
    %109 = vector.extract_strided_slice %103 {offsets = [0, 128], sizes = [2, 20], strides = [1, 1]} : vector<2x512xf32> to vector<2x20xf32>
    %cst_36 = arith.constant 5.000000e-01 : f32
    %110 = vector.broadcast %cst_36 : f32 to vector<2x20xf32>
    %111 = arith.mulf %110, %109 : vector<2x20xf32>
    %cst_37 = arith.constant 5.000000e-01 : f32
    %112 = vector.broadcast %cst_37 : f32 to vector<2x20xf32>
    %113 = arith.addf %111, %112 : vector<2x20xf32>
    %114 = vector.extract_strided_slice %103 {offsets = [0, 256], sizes = [2, 20], strides = [1, 1]} : vector<2x512xf32> to vector<2x20xf32>
    %115 = vector.extract_strided_slice %103 {offsets = [0, 384], sizes = [2, 20], strides = [1, 1]} : vector<2x512xf32> to vector<2x20xf32>
    %cst_38 = arith.constant 5.000000e-01 : f32
    %116 = vector.broadcast %cst_38 : f32 to vector<2x20xf32>
    %117 = arith.mulf %116, %115 : vector<2x20xf32>
    %cst_39 = arith.constant 5.000000e-01 : f32
    %118 = vector.broadcast %cst_39 : f32 to vector<2x20xf32>
    %119 = arith.addf %117, %118 : vector<2x20xf32>
    %120 = arith.mulf %113, %95 : vector<2x20xf32>
    %121 = arith.mulf %108, %114 : vector<2x20xf32>
    %122 = arith.addf %120, %121 : vector<2x20xf32>
    %123 = math.tanh %122 : vector<2x20xf32>
    %124 = arith.mulf %119, %123 : vector<2x20xf32>
    %125 = vector.extract_strided_slice %14 {offsets = [4, 0], sizes = [1, 512], strides = [1, 1]} : vector<16x512xf32> to vector<1x512xf32>
    %126 = vector.extract_strided_slice %14 {offsets = [12, 0], sizes = [1, 512], strides = [1, 1]} : vector<16x512xf32> to vector<1x512xf32>
    %127 = tpu.concatenate %125, %126 in 0 : vector<1x512xf32>, vector<1x512xf32> -> vector<2x512xf32>
    %cst_40 = arith.constant dense<0.000000e+00> : vector<2x512xf32>
    %128 = tpu.matmul %124, %5, %cst_40 {dimension_numbers = #tpu.dot_dimension_numbers<[1], [0], [0], [1], [0, 0, 1, 1], [], []>} : vector<2x20xf32>, vector<20x512xf32>, vector<2x512xf32> -> vector<2x512xf32>
    %129 = arith.addf %127, %128 : vector<2x512xf32>
    %130 = math.tanh %129 : vector<2x512xf32>
    %131 = vector.extract_strided_slice %130 {offsets = [0, 0], sizes = [2, 20], strides = [1, 1]} : vector<2x512xf32> to vector<2x20xf32>
    %cst_41 = arith.constant 5.000000e-01 : f32
    %132 = vector.broadcast %cst_41 : f32 to vector<2x20xf32>
    %133 = arith.mulf %132, %131 : vector<2x20xf32>
    %cst_42 = arith.constant 5.000000e-01 : f32
    %134 = vector.broadcast %cst_42 : f32 to vector<2x20xf32>
    %135 = arith.addf %133, %134 : vector<2x20xf32>
    %136 = vector.extract_strided_slice %130 {offsets = [0, 128], sizes = [2, 20], strides = [1, 1]} : vector<2x512xf32> to vector<2x20xf32>
    %cst_43 = arith.constant 5.000000e-01 : f32
    %137 = vector.broadcast %cst_43 : f32 to vector<2x20xf32>
    %138 = arith.mulf %137, %136 : vector<2x20xf32>
    %cst_44 = arith.constant 5.000000e-01 : f32
    %139 = vector.broadcast %cst_44 : f32 to vector<2x20xf32>
    %140 = arith.addf %138, %139 : vector<2x20xf32>
    %141 = vector.extract_strided_slice %130 {offsets = [0, 256], sizes = [2, 20], strides = [1, 1]} : vector<2x512xf32> to vector<2x20xf32>
    %142 = vector.extract_strided_slice %130 {offsets = [0, 384], sizes = [2, 20], strides = [1, 1]} : vector<2x512xf32> to vector<2x20xf32>
    %cst_45 = arith.constant 5.000000e-01 : f32
    %143 = vector.broadcast %cst_45 : f32 to vector<2x20xf32>
    %144 = arith.mulf %143, %142 : vector<2x20xf32>
    %cst_46 = arith.constant 5.000000e-01 : f32
    %145 = vector.broadcast %cst_46 : f32 to vector<2x20xf32>
    %146 = arith.addf %144, %145 : vector<2x20xf32>
    %147 = arith.mulf %140, %122 : vector<2x20xf32>
    %148 = arith.mulf %135, %141 : vector<2x20xf32>
    %149 = arith.addf %147, %148 : vector<2x20xf32>
    %150 = math.tanh %149 : vector<2x20xf32>
    %151 = arith.mulf %146, %150 : vector<2x20xf32>
    %152 = vector.extract_strided_slice %14 {offsets = [5, 0], sizes = [1, 512], strides = [1, 1]} : vector<16x512xf32> to vector<1x512xf32>
    %153 = vector.extract_strided_slice %14 {offsets = [13, 0], sizes = [1, 512], strides = [1, 1]} : vector<16x512xf32> to vector<1x512xf32>
    %154 = tpu.concatenate %152, %153 in 0 : vector<1x512xf32>, vector<1x512xf32> -> vector<2x512xf32>
    %cst_47 = arith.constant dense<0.000000e+00> : vector<2x512xf32>
    %155 = tpu.matmul %151, %5, %cst_47 {dimension_numbers = #tpu.dot_dimension_numbers<[1], [0], [0], [1], [0, 0, 1, 1], [], []>} : vector<2x20xf32>, vector<20x512xf32>, vector<2x512xf32> -> vector<2x512xf32>
    %156 = arith.addf %154, %155 : vector<2x512xf32>
    %157 = math.tanh %156 : vector<2x512xf32>
    %158 = vector.extract_strided_slice %157 {offsets = [0, 0], sizes = [2, 20], strides = [1, 1]} : vector<2x512xf32> to vector<2x20xf32>
    %cst_48 = arith.constant 5.000000e-01 : f32
    %159 = vector.broadcast %cst_48 : f32 to vector<2x20xf32>
    %160 = arith.mulf %159, %158 : vector<2x20xf32>
    %cst_49 = arith.constant 5.000000e-01 : f32
    %161 = vector.broadcast %cst_49 : f32 to vector<2x20xf32>
    %162 = arith.addf %160, %161 : vector<2x20xf32>
    %163 = vector.extract_strided_slice %157 {offsets = [0, 128], sizes = [2, 20], strides = [1, 1]} : vector<2x512xf32> to vector<2x20xf32>
    %cst_50 = arith.constant 5.000000e-01 : f32
    %164 = vector.broadcast %cst_50 : f32 to vector<2x20xf32>
    %165 = arith.mulf %164, %163 : vector<2x20xf32>
    %cst_51 = arith.constant 5.000000e-01 : f32
    %166 = vector.broadcast %cst_51 : f32 to vector<2x20xf32>
    %167 = arith.addf %165, %166 : vector<2x20xf32>
    %168 = vector.extract_strided_slice %157 {offsets = [0, 256], sizes = [2, 20], strides = [1, 1]} : vector<2x512xf32> to vector<2x20xf32>
    %169 = vector.extract_strided_slice %157 {offsets = [0, 384], sizes = [2, 20], strides = [1, 1]} : vector<2x512xf32> to vector<2x20xf32>
    %cst_52 = arith.constant 5.000000e-01 : f32
    %170 = vector.broadcast %cst_52 : f32 to vector<2x20xf32>
    %171 = arith.mulf %170, %169 : vector<2x20xf32>
    %cst_53 = arith.constant 5.000000e-01 : f32
    %172 = vector.broadcast %cst_53 : f32 to vector<2x20xf32>
    %173 = arith.addf %171, %172 : vector<2x20xf32>
    %174 = arith.mulf %167, %149 : vector<2x20xf32>
    %175 = arith.mulf %162, %168 : vector<2x20xf32>
    %176 = arith.addf %174, %175 : vector<2x20xf32>
    %177 = math.tanh %176 : vector<2x20xf32>
    %178 = arith.mulf %173, %177 : vector<2x20xf32>
    %179 = vector.extract_strided_slice %14 {offsets = [6, 0], sizes = [1, 512], strides = [1, 1]} : vector<16x512xf32> to vector<1x512xf32>
    %180 = vector.extract_strided_slice %14 {offsets = [14, 0], sizes = [1, 512], strides = [1, 1]} : vector<16x512xf32> to vector<1x512xf32>
    %181 = tpu.concatenate %179, %180 in 0 : vector<1x512xf32>, vector<1x512xf32> -> vector<2x512xf32>
    %cst_54 = arith.constant dense<0.000000e+00> : vector<2x512xf32>
    %182 = tpu.matmul %178, %5, %cst_54 {dimension_numbers = #tpu.dot_dimension_numbers<[1], [0], [0], [1], [0, 0, 1, 1], [], []>} : vector<2x20xf32>, vector<20x512xf32>, vector<2x512xf32> -> vector<2x512xf32>
    %183 = arith.addf %181, %182 : vector<2x512xf32>
    %184 = math.tanh %183 : vector<2x512xf32>
    %185 = vector.extract_strided_slice %184 {offsets = [0, 0], sizes = [2, 20], strides = [1, 1]} : vector<2x512xf32> to vector<2x20xf32>
    %cst_55 = arith.constant 5.000000e-01 : f32
    %186 = vector.broadcast %cst_55 : f32 to vector<2x20xf32>
    %187 = arith.mulf %186, %185 : vector<2x20xf32>
    %cst_56 = arith.constant 5.000000e-01 : f32
    %188 = vector.broadcast %cst_56 : f32 to vector<2x20xf32>
    %189 = arith.addf %187, %188 : vector<2x20xf32>
    %190 = vector.extract_strided_slice %184 {offsets = [0, 128], sizes = [2, 20], strides = [1, 1]} : vector<2x512xf32> to vector<2x20xf32>
    %cst_57 = arith.constant 5.000000e-01 : f32
    %191 = vector.broadcast %cst_57 : f32 to vector<2x20xf32>
    %192 = arith.mulf %191, %190 : vector<2x20xf32>
    %cst_58 = arith.constant 5.000000e-01 : f32
    %193 = vector.broadcast %cst_58 : f32 to vector<2x20xf32>
    %194 = arith.addf %192, %193 : vector<2x20xf32>
    %195 = vector.extract_strided_slice %184 {offsets = [0, 256], sizes = [2, 20], strides = [1, 1]} : vector<2x512xf32> to vector<2x20xf32>
    %196 = vector.extract_strided_slice %184 {offsets = [0, 384], sizes = [2, 20], strides = [1, 1]} : vector<2x512xf32> to vector<2x20xf32>
    %cst_59 = arith.constant 5.000000e-01 : f32
    %197 = vector.broadcast %cst_59 : f32 to vector<2x20xf32>
    %198 = arith.mulf %197, %196 : vector<2x20xf32>
    %cst_60 = arith.constant 5.000000e-01 : f32
    %199 = vector.broadcast %cst_60 : f32 to vector<2x20xf32>
    %200 = arith.addf %198, %199 : vector<2x20xf32>
    %201 = arith.mulf %194, %176 : vector<2x20xf32>
    %202 = arith.mulf %189, %195 : vector<2x20xf32>
    %203 = arith.addf %201, %202 : vector<2x20xf32>
    %204 = math.tanh %203 : vector<2x20xf32>
    %205 = arith.mulf %200, %204 : vector<2x20xf32>
    %206 = vector.extract_strided_slice %14 {offsets = [7, 0], sizes = [1, 512], strides = [1, 1]} : vector<16x512xf32> to vector<1x512xf32>
    %207 = vector.extract_strided_slice %14 {offsets = [15, 0], sizes = [1, 512], strides = [1, 1]} : vector<16x512xf32> to vector<1x512xf32>
    %208 = tpu.concatenate %206, %207 in 0 : vector<1x512xf32>, vector<1x512xf32> -> vector<2x512xf32>
    %cst_61 = arith.constant dense<0.000000e+00> : vector<2x512xf32>
    %209 = tpu.matmul %205, %5, %cst_61 {dimension_numbers = #tpu.dot_dimension_numbers<[1], [0], [0], [1], [0, 0, 1, 1], [], []>} : vector<2x20xf32>, vector<20x512xf32>, vector<2x512xf32> -> vector<2x512xf32>
    %210 = arith.addf %208, %209 : vector<2x512xf32>
    %211 = math.tanh %210 : vector<2x512xf32>
    %212 = vector.extract_strided_slice %211 {offsets = [0, 0], sizes = [2, 20], strides = [1, 1]} : vector<2x512xf32> to vector<2x20xf32>
    %cst_62 = arith.constant 5.000000e-01 : f32
    %213 = vector.broadcast %cst_62 : f32 to vector<2x20xf32>
    %214 = arith.mulf %213, %212 : vector<2x20xf32>
    %cst_63 = arith.constant 5.000000e-01 : f32
    %215 = vector.broadcast %cst_63 : f32 to vector<2x20xf32>
    %216 = arith.addf %214, %215 : vector<2x20xf32>
    %217 = vector.extract_strided_slice %211 {offsets = [0, 128], sizes = [2, 20], strides = [1, 1]} : vector<2x512xf32> to vector<2x20xf32>
    %cst_64 = arith.constant 5.000000e-01 : f32
    %218 = vector.broadcast %cst_64 : f32 to vector<2x20xf32>
    %219 = arith.mulf %218, %217 : vector<2x20xf32>
    %cst_65 = arith.constant 5.000000e-01 : f32
    %220 = vector.broadcast %cst_65 : f32 to vector<2x20xf32>
    %221 = arith.addf %219, %220 : vector<2x20xf32>
    %222 = vector.extract_strided_slice %211 {offsets = [0, 256], sizes = [2, 20], strides = [1, 1]} : vector<2x512xf32> to vector<2x20xf32>
    %223 = vector.extract_strided_slice %211 {offsets = [0, 384], sizes = [2, 20], strides = [1, 1]} : vector<2x512xf32> to vector<2x20xf32>
    %cst_66 = arith.constant 5.000000e-01 : f32
    %224 = vector.broadcast %cst_66 : f32 to vector<2x20xf32>
    %225 = arith.mulf %224, %223 : vector<2x20xf32>
    %cst_67 = arith.constant 5.000000e-01 : f32
    %226 = vector.broadcast %cst_67 : f32 to vector<2x20xf32>
    %227 = arith.addf %225, %226 : vector<2x20xf32>
    %228 = arith.mulf %221, %203 : vector<2x20xf32>
    %229 = arith.mulf %216, %222 : vector<2x20xf32>
    %230 = arith.addf %228, %229 : vector<2x20xf32>
    %231 = math.tanh %230 : vector<2x20xf32>
    %232 = arith.mulf %227, %231 : vector<2x20xf32>
    %cst_68 = arith.constant dense<0.000000e+00> : vector<2x2xf32>
    %233 = tpu.matmul %232, %6, %cst_68 {dimension_numbers = #tpu.dot_dimension_numbers<[1], [0], [0], [1], [0, 0, 1, 1], [], []>} : vector<2x20xf32>, vector<20x2xf32>, vector<2x2xf32> -> vector<2x2xf32>
    %234 = vector.broadcast %3 : vector<1x2xf32> to vector<2x2xf32>
    %235 = arith.addf %233, %234 : vector<2x2xf32>
    %c0_69 = arith.constant 0 : index
    %c0_70 = arith.constant 0 : index
    %236 = vector.load %arg2[%c0_69, %c0_70] : memref<2x2xf32, #tpu.memory_space<vmem>>, vector<2x2xf32>
    tpu.vector_store %arg2[%c0_69, %c0_70], %235 {strides = array<i32>} : memref<2x2xf32, #tpu.memory_space<vmem>>, vector<2x2xf32>,
    return
  }
}

</mosaic_0001>

<llo_original>
// kernel: tpu_custom_call.1
$region0: #{tpu_custom_call.1}
  #allocation0 [shape = 'u32[]', space=smem, size = 0x4, offset = 0x4, fixed_abs, tag = 'smem constant byte address 0x4 - core index']
  #allocation1 [shape = 'u32[72,128]{1,0:T(1,128)}', space=vmem, size = 0x9000, scoped, tag = 'internal scratch']
  %s0 = inlined_call_operand.vmem [shape: f32[16,3], index: 0, kind: input, shape index: {}]
  %s1 = inlined_call_operand.hbm [shape: f32[72,512], index: 1, kind: input, shape index: {}]
  %s2 = inlined_call_operand.hbm [shape: f32[2,2], index: 2, kind: output, shape index: {}]
  %s3 = sld [smem:[#allocation0]]
  $region22: #{tpu_custom_call.1} parent=0
    _
  %s5 = ssub.s32 1, %s3
  %s6 = scalar_select 0, %s5, %s3
  $region1: #{tpu_custom_call.1} parent=0
    #allocation2 [shape = 'u8[147456]{0}', space=vmem, size = 0x24000, scoped, tag = 'input window, operand 1, single buffered']
    #allocation3 [shape = 's32[1]{0}', space=sflag, size = 0x4, scoped, tag = 'scoped memory for tpu_custom_call.1']
    #allocation4 [shape = 's32[1]{0}', space=sflag, size = 0x4, scoped, tag = 'scoped memory for tpu_custom_call.1']
    #allocation5 [shape = 'u8[1024]{0}', space=vmem, size = 0x400, scoped, tag = 'output window, operand 0, single buffered']
    %7 = vsyncpa [#allocation3], 0
    %8 = vsyncpa [#allocation4], 0
    // Predicated region
    $region2: #{tpu_custom_call.1} parent=1 // pred_check
      _
    $region3: #{tpu_custom_call.1} parent=1 // pred_check_branch
      %10 = sbr.rel (0) target = $region5
    $region4: #{tpu_custom_call.1} parent=1 // pred_region
      _
    $region5: #{tpu_custom_call.1} parent=1 // pred_fallthru
      _
    // Predicated region
    $region6: #{tpu_custom_call.1} parent=1 // pred_check
      _
    $region7: #{tpu_custom_call.1} parent=1 // pred_check_branch
      %12 = sbr.rel (0) target = $region9
    $region8: #{tpu_custom_call.1} parent=1 // pred_region
      %14 = vsyncadd [#allocation3], 0
      %s15 = sshll.u32 %s1, 4
      %s16 = int_to_ptr.hbm [resolvable:$true] %s15
      %s17 = sshll.u32 [#allocation2], 4
      %s18 = int_to_ptr.vmem [resolvable:$true] %s17
      %23 = dma.hbm_to_vmem [thread:$0]  %s16, 4608, %s18, [#allocation3], 512, 512, 32
    $region9: #{tpu_custom_call.1} parent=1 // pred_fallthru
      _
    // Predicated region
    $region10: #{tpu_custom_call.1} parent=1 // pred_check
      _
    $region11: #{tpu_custom_call.1} parent=1 // pred_check_branch
      %25 = sbr.rel (0) target = $region13
    $region12: #{tpu_custom_call.1} parent=1 // pred_region
      %27 = dma.done [#allocation3], 4608
    $region13: #{tpu_custom_call.1} parent=1 // pred_fallthru
      _
    %v28 = vld [vmem:[#allocation2] sm:$0x7]
    %v29 = vld [vmem:[#allocation2 + $0x20] ss:$0 sm:$0xff]
    %s30 = scalar_lea.vmem [#allocation2], 33
    %v31 = vld [vmem:[%s30] ss:$8 sm:$0xf]
    %v32 = vld [vmem:[#allocation2 + $0x22] ss:$0 sm:$0xff]
    %v33 = vld [vmem:[#allocation2 + $0x40] sm:$0x1f]
    %v34 = vld [vmem:[#allocation2 + $0x48] sm:$0x1f]
    %v35 = vld [vmem:[#allocation2 + $0x50] sm:$0x1f]
    %v36 = vld [vmem:[#allocation2 + $0x58] sm:$0x1f]
    %v37 = vld [vmem:[#allocation2 + $0x60] sm:$0xff]
    %v38 = vld [vmem:[#allocation2 + $0x68] sm:$0xff]
    %v39 = vld [vmem:[#allocation2 + $0x70] sm:$0xff]
    %v40 = vld [vmem:[#allocation2 + $0x78] sm:$0xff]
    %v41 = vld [vmem:[#allocation2 + $0x80] sm:$0xff]
    %v42 = vld [vmem:[#allocation2 + $0x88] sm:$0xff]
    %v43 = vld [vmem:[#allocation2 + $0x90] sm:$0xff]
    %v44 = vld [vmem:[#allocation2 + $0x98] sm:$0xff]
    %v45 = vld [vmem:[#allocation2 + $0xa0] sm:$0xf]
    %v46 = vld [vmem:[#allocation2 + $0xa8] sm:$0xf]
    %v47 = vld [vmem:[#allocation2 + $0xb0] sm:$0xf]
    %v48 = vld [vmem:[#allocation2 + $0xb8] sm:$0xf]
    %v49 = vld [vmem:[#allocation2 + $0xc0] sm:$0xff]
    %v50 = vld [vmem:[#allocation2 + $0xe0] sm:$0xff]
    %v51 = vld [vmem:[#allocation2 + $0x100] sm:$0xf]
    %v52 = vld [vmem:[%s0] sm:$0xff]
    %v53 = vld [vmem:[%s0 + $0x8] sm:$0xff]
    %vm54 = vcmask 23552
    %v56 = vsel %vm54, %v52, 0
    %v59 = vsel %vm54, %v53, 0
    %vm61 = vcmask 1042432
    %v63 = vsel %vm61, %v28, 0
    %65 = vmatpush.msra.mxu0 0.0
    %66 = vmatpush.msra.mxu0 0.0
    %67 = vmatpush.msra.mxu0 0.0
    %68 = vmatpush.msra.mxu0 0.0
    %69 = vmatpush.msra.mxu0 0.0
    %70 = vmatpush.msra.mxu0 0.0
    %71 = vmatpush.msra.mxu0 0.0
    %72 = vmatpush.msra.mxu0 0.0
    %73 = vmatpush.msra.mxu0 0.0
    %74 = vmatpush.msra.mxu0 0.0
    %75 = vmatpush.msra.mxu0 0.0
    %76 = vmatpush.msra.mxu0 0.0
    %77 = vmatpush.msra.mxu0 0.0
    %78 = vmatpush.msra.mxu0 0.0
    %79 = vmatpush.msra.mxu0 0.0
    %80 = vmatpush.msra.mxu0 %v63
    %81 = vmatmul.f32.gmra.mxu0 %v56
    %v82 = vpop.f32.mrf.mxu0
    %v83 = vadd.f32 %v29, %v82
    %84 = vmatmul.f32.gmra.mxu0 %v59
    %v85 = vpop.f32.mrf.mxu0
    %v86 = vadd.f32 %v29, %v85
    %87 = vdwg.mxu0
    %v88 = vtanh.pop %v83
    %v89 = vtanh.pop %v86
    %v91 = vperm.slane %v31, 0
    %v92 = vperm.slane %v31, 1
    %v93 = vperm.slane %v31, 2
    %v94 = vperm.slane %v31, 3
    %vm99 = vcmask 39936
    %v101 = vsel %vm99, %v88, 0
    %v104 = vsel %vm99, %v89, 0
    %vm106 = vcmask 1044480
    %v108 = vsel %vm106, %v33, 0
    %v111 = vsel %vm106, %v34, 0
    %v114 = vsel %vm106, %v35, 0
    %v117 = vsel %vm106, %v36, 0
    %119 = vmatpush.msra.mxu0 0.0
    %120 = vmatpush.msra.mxu0 0.0
    %121 = vmatpush.msra.mxu0 0.0
    %122 = vmatpush.msra.mxu0 0.0
    %123 = vmatpush.msra.mxu0 0.0
    %124 = vmatpush.msra.mxu0 0.0
    %125 = vmatpush.msra.mxu0 0.0
    %126 = vmatpush.msra.mxu0 0.0
    %127 = vmatpush.msra.mxu0 0.0
    %128 = vmatpush.msra.mxu0 0.0
    %129 = vmatpush.msra.mxu0 0.0
    %130 = vmatpush.msra.mxu0 0.0
    %131 = vmatpush.msra.mxu0 0.0
    %132 = vmatpush.msra.mxu0 0.0
    %133 = vmatpush.msra.mxu0 0.0
    %134 = vmatpush.msra.mxu0 %v108
    %135 = vmatmul.f32.gmra.mxu0 %v101
    %v136 = vpop.f32.mrf.mxu0
    %v137 = vadd.f32 %v91, %v136
    %138 = vmatmul.f32.gmra.mxu0 %v104
    %v139 = vpop.f32.mrf.mxu0
    %v140 = vadd.f32 %v91, %v139
    %141 = vdwg.mxu0
    %142 = vmatpush.msra.mxu0 0.0
    %143 = vmatpush.msra.mxu0 0.0
    %144 = vmatpush.msra.mxu0 0.0
    %145 = vmatpush.msra.mxu0 0.0
    %146 = vmatpush.msra.mxu0 0.0
    %147 = vmatpush.msra.mxu0 0.0
    %148 = vmatpush.msra.mxu0 0.0
    %149 = vmatpush.msra.mxu0 0.0
    %150 = vmatpush.msra.mxu0 0.0
    %151 = vmatpush.msra.mxu0 0.0
    %152 = vmatpush.msra.mxu0 0.0
    %153 = vmatpush.msra.mxu0 0.0
    %154 = vmatpush.msra.mxu0 0.0
    %155 = vmatpush.msra.mxu0 0.0
    %156 = vmatpush.msra.mxu0 0.0
    %157 = vmatpush.msra.mxu0 %v111
    %158 = vmatmul.f32.gmra.mxu0 %v101
    %v159 = vpop.f32.mrf.mxu0
    %v160 = vadd.f32 %v92, %v159
    %161 = vmatmul.f32.gmra.mxu0 %v104
    %v162 = vpop.f32.mrf.mxu0
    %v163 = vadd.f32 %v92, %v162
    %164 = vdwg.mxu0
    %165 = vmatpush.msra.mxu0 0.0
    %166 = vmatpush.msra.mxu0 0.0
    %167 = vmatpush.msra.mxu0 0.0
    %168 = vmatpush.msra.mxu0 0.0
    %169 = vmatpush.msra.mxu0 0.0
    %170 = vmatpush.msra.mxu0 0.0
    %171 = vmatpush.msra.mxu0 0.0
    %172 = vmatpush.msra.mxu0 0.0
    %173 = vmatpush.msra.mxu0 0.0
    %174 = vmatpush.msra.mxu0 0.0
    %175 = vmatpush.msra.mxu0 0.0
    %176 = vmatpush.msra.mxu0 0.0
    %177 = vmatpush.msra.mxu0 0.0
    %178 = vmatpush.msra.mxu0 0.0
    %179 = vmatpush.msra.mxu0 0.0
    %180 = vmatpush.msra.mxu0 %v114
    %181 = vmatmul.f32.gmra.mxu0 %v101
    %v182 = vpop.f32.mrf.mxu0
    %v183 = vadd.f32 %v93, %v182
    %184 = vmatmul.f32.gmra.mxu0 %v104
    %v185 = vpop.f32.mrf.mxu0
    %v186 = vadd.f32 %v93, %v185
    %187 = vdwg.mxu0
    %188 = vmatpush.msra.mxu0 0.0
    %189 = vmatpush.msra.mxu0 0.0
    %190 = vmatpush.msra.mxu0 0.0
    %191 = vmatpush.msra.mxu0 0.0
    %192 = vmatpush.msra.mxu0 0.0
    %193 = vmatpush.msra.mxu0 0.0
    %194 = vmatpush.msra.mxu0 0.0
    %195 = vmatpush.msra.mxu0 0.0
    %196 = vmatpush.msra.mxu0 0.0
    %197 = vmatpush.msra.mxu0 0.0
    %198 = vmatpush.msra.mxu0 0.0
    %199 = vmatpush.msra.mxu0 0.0
    %200 = vmatpush.msra.mxu0 0.0
    %201 = vmatpush.msra.mxu0 0.0
    %202 = vmatpush.msra.mxu0 0.0
    %203 = vmatpush.msra.mxu0 %v117
    %204 = vmatmul.f32.gmra.mxu0 %v101
    %v205 = vpop.f32.mrf.mxu0
    %v206 = vadd.f32 %v94, %v205
    %207 = vmatmul.f32.gmra.mxu0 %v104
    %v208 = vpop.f32.mrf.mxu0
    %v209 = vadd.f32 %v94, %v208
    %210 = vdwg.mxu0
    %v215 = vrot.slane %v140, 7
    %v216 = vrot.slane %v163, 7
    %v217 = vrot.slane %v186, 7
    %v218 = vrot.slane %v209, 7
    %vm223 = vcmask 1040384
    %v224 = vsel %vm223, %v137, %v215
    %v225 = vsel %vm223, %v160, %v216
    %v226 = vsel %vm223, %v183, %v217
    %v227 = vsel %vm223, %v206, %v218
    %vm228 = vcmask 162816
    %v230 = vsel %vm228, 0.0, 0
    %vm232 = vcmask 1043456
    %v234 = vsel %vm232, %v45, 0
    %v237 = vsel %vm232, %v46, 0
    %v240 = vsel %vm232, %v47, 0
    %v243 = vsel %vm232, %v48, 0
    %245 = vmatpush.msra.mxu0 0.0
    %246 = vmatpush.msra.mxu0 0.0
    %247 = vmatpush.msra.mxu0 0.0
    %248 = vmatpush.msra.mxu0 0.0
    %249 = vmatpush.msra.mxu0 0.0
    %250 = vmatpush.msra.mxu0 0.0
    %251 = vmatpush.msra.mxu0 0.0
    %252 = vmatpush.msra.mxu0 0.0
    %253 = vmatpush.msra.mxu0 0.0
    %254 = vmatpush.msra.mxu0 0.0
    %255 = vmatpush.msra.mxu0 0.0
    %256 = vmatpush.msra.mxu0 0.0
    %257 = vmatpush.msra.mxu0 0.0
    %258 = vmatpush.msra.mxu0 %v234
    %259 = vmatpush.msra.mxu0 %v41
    %260 = vmatpush.msra.mxu0 %v37
    %261 = vmatmul.f32.gmra.mxu0 %v230
    %v262 = vpop.f32.mrf.mxu0
    %v263 = vadd.f32 0.0, %v262
    %264 = vdwg.mxu0
    %265 = vmatpush.msra.mxu0 0.0
    %266 = vmatpush.msra.mxu0 0.0
    %267 = vmatpush.msra.mxu0 0.0
    %268 = vmatpush.msra.mxu0 0.0
    %269 = vmatpush.msra.mxu0 0.0
    %270 = vmatpush.msra.mxu0 0.0
    %271 = vmatpush.msra.mxu0 0.0
    %272 = vmatpush.msra.mxu0 0.0
    %273 = vmatpush.msra.mxu0 0.0
    %274 = vmatpush.msra.mxu0 0.0
    %275 = vmatpush.msra.mxu0 0.0
    %276 = vmatpush.msra.mxu0 0.0
    %277 = vmatpush.msra.mxu0 0.0
    %278 = vmatpush.msra.mxu0 %v237
    %279 = vmatpush.msra.mxu0 %v42
    %280 = vmatpush.msra.mxu0 %v38
    %281 = vmatmul.f32.gmra.mxu0 %v230
    %v282 = vpop.f32.mrf.mxu0
    %v283 = vadd.f32 0.0, %v282
    %284 = vdwg.mxu0
    %285 = vmatpush.msra.mxu0 0.0
    %286 = vmatpush.msra.mxu0 0.0
    %287 = vmatpush.msra.mxu0 0.0
    %288 = vmatpush.msra.mxu0 0.0
    %289 = vmatpush.msra.mxu0 0.0
    %290 = vmatpush.msra.mxu0 0.0
    %291 = vmatpush.msra.mxu0 0.0
    %292 = vmatpush.msra.mxu0 0.0
    %293 = vmatpush.msra.mxu0 0.0
    %294 = vmatpush.msra.mxu0 0.0
    %295 = vmatpush.msra.mxu0 0.0
    %296 = vmatpush.msra.mxu0 0.0
    %297 = vmatpush.msra.mxu0 0.0
    %298 = vmatpush.msra.mxu0 %v240
    %299 = vmatpush.msra.mxu0 %v43
    %300 = vmatpush.msra.mxu0 %v39
    %301 = vmatmul.f32.gmra.mxu0 %v230
    %v302 = vpop.f32.mrf.mxu0
    %v303 = vadd.f32 0.0, %v302
    %304 = vdwg.mxu0
    %305 = vmatpush.msra.mxu0 0.0
    %306 = vmatpush.msra.mxu0 0.0
    %307 = vmatpush.msra.mxu0 0.0
    %308 = vmatpush.msra.mxu0 0.0
    %309 = vmatpush.msra.mxu0 0.0
    %310 = vmatpush.msra.mxu0 0.0
    %311 = vmatpush.msra.mxu0 0.0
    %312 = vmatpush.msra.mxu0 0.0
    %313 = vmatpush.msra.mxu0 0.0
    %314 = vmatpush.msra.mxu0 0.0
    %315 = vmatpush.msra.mxu0 0.0
    %316 = vmatpush.msra.mxu0 0.0
    %317 = vmatpush.msra.mxu0 0.0
    %318 = vmatpush.msra.mxu0 %v243
    %319 = vmatpush.msra.mxu0 %v44
    %320 = vmatpush.msra.mxu0 %v40
    %321 = vmatmul.f32.gmra.mxu0 %v230
    %v322 = vpop.f32.mrf.mxu0
    %v323 = vadd.f32 0.0, %v322
    %324 = vdwg.mxu0
    %v325 = vadd.f32 %v224, %v263
    %v326 = vadd.f32 %v225, %v283
    %v327 = vadd.f32 %v226, %v303
    %v328 = vadd.f32 %v227, %v323
    %v329 = vtanh.pop %v325
    %v330 = vtanh.pop %v326
    %v331 = vtanh.pop %v327
    %v332 = vtanh.pop %v328
    %v333 = vmul.f32 %v329, 0.5
    %v334 = vadd.f32 %v333, 0.5
    %v335 = vmul.f32 %v330, 0.5
    %v336 = vadd.f32 %v335, 0.5
    %v337 = vmul.f32 %v332, 0.5
    %v338 = vadd.f32 %v337, 0.5
    %v339 = vmul.f32 %v336, 0.0
    %v340 = vmul.f32 %v334, %v331
    %v341 = vadd.f32 %v339, %v340
    %v342 = vtanh.pop %v341
    %v343 = vmul.f32 %v338, %v342
    %v348 = vrot.slane %v137, 1
    %v349 = vrot.slane %v160, 1
    %v350 = vrot.slane %v183, 1
    %v351 = vrot.slane %v206, 1
    %v356 = vsel %vm223, %v348, %v140
    %v357 = vsel %vm223, %v349, %v163
    %v358 = vsel %vm223, %v350, %v186
    %v359 = vsel %vm223, %v351, %v209
    %v361 = vsel %vm228, %v343, 0
    %363 = vmatpush.msra.mxu0 0.0
    %364 = vmatpush.msra.mxu0 0.0
    %365 = vmatpush.msra.mxu0 0.0
    %366 = vmatpush.msra.mxu0 0.0
    %367 = vmatpush.msra.mxu0 0.0
    %368 = vmatpush.msra.mxu0 0.0
    %369 = vmatpush.msra.mxu0 0.0
    %370 = vmatpush.msra.mxu0 0.0
    %371 = vmatpush.msra.mxu0 0.0
    %372 = vmatpush.msra.mxu0 0.0
    %373 = vmatpush.msra.mxu0 0.0
    %374 = vmatpush.msra.mxu0 0.0
    %375 = vmatpush.msra.mxu0 0.0
    %376 = vmatpush.msra.mxu0 %v234
    %377 = vmatpush.msra.mxu0 %v41
    %378 = vmatpush.msra.mxu0 %v37
    %379 = vmatmul.f32.gmra.mxu0 %v361
    %v380 = vpop.f32.mrf.mxu0
    %v381 = vadd.f32 0.0, %v380
    %382 = vdwg.mxu0
    %383 = vmatpush.msra.mxu0 0.0
    %384 = vmatpush.msra.mxu0 0.0
    %385 = vmatpush.msra.mxu0 0.0
    %386 = vmatpush.msra.mxu0 0.0
    %387 = vmatpush.msra.mxu0 0.0
    %388 = vmatpush.msra.mxu0 0.0
    %389 = vmatpush.msra.mxu0 0.0
    %390 = vmatpush.msra.mxu0 0.0
    %391 = vmatpush.msra.mxu0 0.0
    %392 = vmatpush.msra.mxu0 0.0
    %393 = vmatpush.msra.mxu0 0.0
    %394 = vmatpush.msra.mxu0 0.0
    %395 = vmatpush.msra.mxu0 0.0
    %396 = vmatpush.msra.mxu0 %v237
    %397 = vmatpush.msra.mxu0 %v42
    %398 = vmatpush.msra.mxu0 %v38
    %399 = vmatmul.f32.gmra.mxu0 %v361
    %v400 = vpop.f32.mrf.mxu0
    %v401 = vadd.f32 0.0, %v400
    %402 = vdwg.mxu0
    %403 = vmatpush.msra.mxu0 0.0
    %404 = vmatpush.msra.mxu0 0.0
    %405 = vmatpush.msra.mxu0 0.0
    %406 = vmatpush.msra.mxu0 0.0
    %407 = vmatpush.msra.mxu0 0.0
    %408 = vmatpush.msra.mxu0 0.0
    %409 = vmatpush.msra.mxu0 0.0
    %410 = vmatpush.msra.mxu0 0.0
    %411 = vmatpush.msra.mxu0 0.0
    %412 = vmatpush.msra.mxu0 0.0
    %413 = vmatpush.msra.mxu0 0.0
    %414 = vmatpush.msra.mxu0 0.0
    %415 = vmatpush.msra.mxu0 0.0
    %416 = vmatpush.msra.mxu0 %v240
    %417 = vmatpush.msra.mxu0 %v43
    %418 = vmatpush.msra.mxu0 %v39
    %419 = vmatmul.f32.gmra.mxu0 %v361
    %v420 = vpop.f32.mrf.mxu0
    %v421 = vadd.f32 0.0, %v420
    %422 = vdwg.mxu0
    %423 = vmatpush.msra.mxu0 0.0
    %424 = vmatpush.msra.mxu0 0.0
    %425 = vmatpush.msra.mxu0 0.0
    %426 = vmatpush.msra.mxu0 0.0
    %427 = vmatpush.msra.mxu0 0.0
    %428 = vmatpush.msra.mxu0 0.0
    %429 = vmatpush.msra.mxu0 0.0
    %430 = vmatpush.msra.mxu0 0.0
    %431 = vmatpush.msra.mxu0 0.0
    %432 = vmatpush.msra.mxu0 0.0
    %433 = vmatpush.msra.mxu0 0.0
    %434 = vmatpush.msra.mxu0 0.0
    %435 = vmatpush.msra.mxu0 0.0
    %436 = vmatpush.msra.mxu0 %v243
    %437 = vmatpush.msra.mxu0 %v44
    %438 = vmatpush.msra.mxu0 %v40
    %439 = vmatmul.f32.gmra.mxu0 %v361
    %v440 = vpop.f32.mrf.mxu0
    %v441 = vadd.f32 0.0, %v440
    %442 = vdwg.mxu0
    %v443 = vadd.f32 %v356, %v381
    %v444 = vadd.f32 %v357, %v401
    %v445 = vadd.f32 %v358, %v421
    %v446 = vadd.f32 %v359, %v441
    %v447 = vtanh.pop %v443
    %v448 = vtanh.pop %v444
    %v449 = vtanh.pop %v445
    %v450 = vtanh.pop %v446
    %v451 = vmul.f32 %v447, 0.5
    %v452 = vadd.f32 %v451, 0.5
    %v453 = vmul.f32 %v448, 0.5
    %v454 = vadd.f32 %v453, 0.5
    %v455 = vmul.f32 %v450, 0.5
    %v456 = vadd.f32 %v455, 0.5
    %v457 = vmul.f32 %v454, %v341
    %v458 = vmul.f32 %v452, %v449
    %v459 = vadd.f32 %v457, %v458
    %v460 = vtanh.pop %v459
    %v461 = vmul.f32 %v456, %v460
    %v462 = vrot.slane %v137, 2
    %v463 = vrot.slane %v160, 2
    %v464 = vrot.slane %v183, 2
    %v465 = vrot.slane %v206, 2
    %v470 = vrot.slane %v140, 1
    %v471 = vrot.slane %v163, 1
    %v472 = vrot.slane %v186, 1
    %v473 = vrot.slane %v209, 1
    %v478 = vsel %vm223, %v462, %v470
    %v479 = vsel %vm223, %v463, %v471
    %v480 = vsel %vm223, %v464, %v472
    %v481 = vsel %vm223, %v465, %v473
    %v483 = vsel %vm228, %v461, 0
    %485 = vmatpush.msra.mxu0 0.0
    %486 = vmatpush.msra.mxu0 0.0
    %487 = vmatpush.msra.mxu0 0.0
    %488 = vmatpush.msra.mxu0 0.0
    %489 = vmatpush.msra.mxu0 0.0
    %490 = vmatpush.msra.mxu0 0.0
    %491 = vmatpush.msra.mxu0 0.0
    %492 = vmatpush.msra.mxu0 0.0
    %493 = vmatpush.msra.mxu0 0.0
    %494 = vmatpush.msra.mxu0 0.0
    %495 = vmatpush.msra.mxu0 0.0
    %496 = vmatpush.msra.mxu0 0.0
    %497 = vmatpush.msra.mxu0 0.0
    %498 = vmatpush.msra.mxu0 %v234
    %499 = vmatpush.msra.mxu0 %v41
    %500 = vmatpush.msra.mxu0 %v37
    %501 = vmatmul.f32.gmra.mxu0 %v483
    %v502 = vpop.f32.mrf.mxu0
    %v503 = vadd.f32 0.0, %v502
    %504 = vdwg.mxu0
    %505 = vmatpush.msra.mxu0 0.0
    %506 = vmatpush.msra.mxu0 0.0
    %507 = vmatpush.msra.mxu0 0.0
    %508 = vmatpush.msra.mxu0 0.0
    %509 = vmatpush.msra.mxu0 0.0
    %510 = vmatpush.msra.mxu0 0.0
    %511 = vmatpush.msra.mxu0 0.0
    %512 = vmatpush.msra.mxu0 0.0
    %513 = vmatpush.msra.mxu0 0.0
    %514 = vmatpush.msra.mxu0 0.0
    %515 = vmatpush.msra.mxu0 0.0
    %516 = vmatpush.msra.mxu0 0.0
    %517 = vmatpush.msra.mxu0 0.0
    %518 = vmatpush.msra.mxu0 %v237
    %519 = vmatpush.msra.mxu0 %v42
    %520 = vmatpush.msra.mxu0 %v38
    %521 = vmatmul.f32.gmra.mxu0 %v483
    %v522 = vpop.f32.mrf.mxu0
    %v523 = vadd.f32 0.0, %v522
    %524 = vdwg.mxu0
    %525 = vmatpush.msra.mxu0 0.0
    %526 = vmatpush.msra.mxu0 0.0
    %527 = vmatpush.msra.mxu0 0.0
    %528 = vmatpush.msra.mxu0 0.0
    %529 = vmatpush.msra.mxu0 0.0
    %530 = vmatpush.msra.mxu0 0.0
    %531 = vmatpush.msra.mxu0 0.0
    %532 = vmatpush.msra.mxu0 0.0
    %533 = vmatpush.msra.mxu0 0.0
    %534 = vmatpush.msra.mxu0 0.0
    %535 = vmatpush.msra.mxu0 0.0
    %536 = vmatpush.msra.mxu0 0.0
    %537 = vmatpush.msra.mxu0 0.0
    %538 = vmatpush.msra.mxu0 %v240
    %539 = vmatpush.msra.mxu0 %v43
    %540 = vmatpush.msra.mxu0 %v39
    %541 = vmatmul.f32.gmra.mxu0 %v483
    %v542 = vpop.f32.mrf.mxu0
    %v543 = vadd.f32 0.0, %v542
    %544 = vdwg.mxu0
    %545 = vmatpush.msra.mxu0 0.0
    %546 = vmatpush.msra.mxu0 0.0
    %547 = vmatpush.msra.mxu0 0.0
    %548 = vmatpush.msra.mxu0 0.0
    %549 = vmatpush.msra.mxu0 0.0
    %550 = vmatpush.msra.mxu0 0.0
    %551 = vmatpush.msra.mxu0 0.0
    %552 = vmatpush.msra.mxu0 0.0
    %553 = vmatpush.msra.mxu0 0.0
    %554 = vmatpush.msra.mxu0 0.0
    %555 = vmatpush.msra.mxu0 0.0
    %556 = vmatpush.msra.mxu0 0.0
    %557 = vmatpush.msra.mxu0 0.0
    %558 = vmatpush.msra.mxu0 %v243
    %559 = vmatpush.msra.mxu0 %v44
    %560 = vmatpush.msra.mxu0 %v40
    %561 = vmatmul.f32.gmra.mxu0 %v483
    %v562 = vpop.f32.mrf.mxu0
    %v563 = vadd.f32 0.0, %v562
    %564 = vdwg.mxu0
    %v565 = vadd.f32 %v478, %v503
    %v566 = vadd.f32 %v479, %v523
    %v567 = vadd.f32 %v480, %v543
    %v568 = vadd.f32 %v481, %v563
    %v569 = vtanh.pop %v565
    %v570 = vtanh.pop %v566
    %v571 = vtanh.pop %v567
    %v572 = vtanh.pop %v568
    %v573 = vmul.f32 %v569, 0.5
    %v574 = vadd.f32 %v573, 0.5
    %v575 = vmul.f32 %v570, 0.5
    %v576 = vadd.f32 %v575, 0.5
    %v577 = vmul.f32 %v572, 0.5
    %v578 = vadd.f32 %v577, 0.5
    %v579 = vmul.f32 %v576, %v459
    %v580 = vmul.f32 %v574, %v571
    %v581 = vadd.f32 %v579, %v580
    %v582 = vtanh.pop %v581
    %v583 = vmul.f32 %v578, %v582
    %v584 = vrot.slane %v137, 3
    %v585 = vrot.slane %v160, 3
    %v586 = vrot.slane %v183, 3
    %v587 = vrot.slane %v206, 3
    %v592 = vrot.slane %v140, 2
    %v593 = vrot.slane %v163, 2
    %v594 = vrot.slane %v186, 2
    %v595 = vrot.slane %v209, 2
    %v600 = vsel %vm223, %v584, %v592
    %v601 = vsel %vm223, %v585, %v593
    %v602 = vsel %vm223, %v586, %v594
    %v603 = vsel %vm223, %v587, %v595
    %v605 = vsel %vm228, %v583, 0
    %607 = vmatpush.msra.mxu0 0.0
    %608 = vmatpush.msra.mxu0 0.0
    %609 = vmatpush.msra.mxu0 0.0
    %610 = vmatpush.msra.mxu0 0.0
    %611 = vmatpush.msra.mxu0 0.0
    %612 = vmatpush.msra.mxu0 0.0
    %613 = vmatpush.msra.mxu0 0.0
    %614 = vmatpush.msra.mxu0 0.0
    %615 = vmatpush.msra.mxu0 0.0
    %616 = vmatpush.msra.mxu0 0.0
    %617 = vmatpush.msra.mxu0 0.0
    %618 = vmatpush.msra.mxu0 0.0
    %619 = vmatpush.msra.mxu0 0.0
    %620 = vmatpush.msra.mxu0 %v234
    %621 = vmatpush.msra.mxu0 %v41
    %622 = vmatpush.msra.mxu0 %v37
    %623 = vmatmul.f32.gmra.mxu0 %v605
    %v624 = vpop.f32.mrf.mxu0
    %v625 = vadd.f32 0.0, %v624
    %626 = vdwg.mxu0
    %627 = vmatpush.msra.mxu0 0.0
    %628 = vmatpush.msra.mxu0 0.0
    %629 = vmatpush.msra.mxu0 0.0
    %630 = vmatpush.msra.mxu0 0.0
    %631 = vmatpush.msra.mxu0 0.0
    %632 = vmatpush.msra.mxu0 0.0
    %633 = vmatpush.msra.mxu0 0.0
    %634 = vmatpush.msra.mxu0 0.0
    %635 = vmatpush.msra.mxu0 0.0
    %636 = vmatpush.msra.mxu0 0.0
    %637 = vmatpush.msra.mxu0 0.0
    %638 = vmatpush.msra.mxu0 0.0
    %639 = vmatpush.msra.mxu0 0.0
    %640 = vmatpush.msra.mxu0 %v237
    %641 = vmatpush.msra.mxu0 %v42
    %642 = vmatpush.msra.mxu0 %v38
    %643 = vmatmul.f32.gmra.mxu0 %v605
    %v644 = vpop.f32.mrf.mxu0
    %v645 = vadd.f32 0.0, %v644
    %646 = vdwg.mxu0
    %647 = vmatpush.msra.mxu0 0.0
    %648 = vmatpush.msra.mxu0 0.0
    %649 = vmatpush.msra.mxu0 0.0
    %650 = vmatpush.msra.mxu0 0.0
    %651 = vmatpush.msra.mxu0 0.0
    %652 = vmatpush.msra.mxu0 0.0
    %653 = vmatpush.msra.mxu0 0.0
    %654 = vmatpush.msra.mxu0 0.0
    %655 = vmatpush.msra.mxu0 0.0
    %656 = vmatpush.msra.mxu0 0.0
    %657 = vmatpush.msra.mxu0 0.0
    %658 = vmatpush.msra.mxu0 0.0
    %659 = vmatpush.msra.mxu0 0.0
    %660 = vmatpush.msra.mxu0 %v240
    %661 = vmatpush.msra.mxu0 %v43
    %662 = vmatpush.msra.mxu0 %v39
    %663 = vmatmul.f32.gmra.mxu0 %v605
    %v664 = vpop.f32.mrf.mxu0
    %v665 = vadd.f32 0.0, %v664
    %666 = vdwg.mxu0
    %667 = vmatpush.msra.mxu0 0.0
    %668 = vmatpush.msra.mxu0 0.0
    %669 = vmatpush.msra.mxu0 0.0
    %670 = vmatpush.msra.mxu0 0.0
    %671 = vmatpush.msra.mxu0 0.0
    %672 = vmatpush.msra.mxu0 0.0
    %673 = vmatpush.msra.mxu0 0.0
    %674 = vmatpush.msra.mxu0 0.0
    %675 = vmatpush.msra.mxu0 0.0
    %676 = vmatpush.msra.mxu0 0.0
    %677 = vmatpush.msra.mxu0 0.0
    %678 = vmatpush.msra.mxu0 0.0
    %679 = vmatpush.msra.mxu0 0.0
    %680 = vmatpush.msra.mxu0 %v243
    %681 = vmatpush.msra.mxu0 %v44
    %682 = vmatpush.msra.mxu0 %v40
    %683 = vmatmul.f32.gmra.mxu0 %v605
    %v684 = vpop.f32.mrf.mxu0
    %v685 = vadd.f32 0.0, %v684
    %686 = vdwg.mxu0
    %v687 = vadd.f32 %v600, %v625
    %v688 = vadd.f32 %v601, %v645
    %v689 = vadd.f32 %v602, %v665
    %v690 = vadd.f32 %v603, %v685
    %v691 = vtanh.pop %v687
    %v692 = vtanh.pop %v688
    %v693 = vtanh.pop %v689
    %v694 = vtanh.pop %v690
    %v695 = vmul.f32 %v691, 0.5
    %v696 = vadd.f32 %v695, 0.5
    %v697 = vmul.f32 %v692, 0.5
    %v698 = vadd.f32 %v697, 0.5
    %v699 = vmul.f32 %v694, 0.5
    %v700 = vadd.f32 %v699, 0.5
    %v701 = vmul.f32 %v698, %v581
    %v702 = vmul.f32 %v696, %v693
    %v703 = vadd.f32 %v701, %v702
    %v704 = vtanh.pop %v703
    %v705 = vmul.f32 %v700, %v704
    %v706 = vrot.slane %v137, 4
    %v707 = vrot.slane %v160, 4
    %v708 = vrot.slane %v183, 4
    %v709 = vrot.slane %v206, 4
    %v714 = vrot.slane %v140, 3
    %v715 = vrot.slane %v163, 3
    %v716 = vrot.slane %v186, 3
    %v717 = vrot.slane %v209, 3
    %v722 = vsel %vm223, %v706, %v714
    %v723 = vsel %vm223, %v707, %v715
    %v724 = vsel %vm223, %v708, %v716
    %v725 = vsel %vm223, %v709, %v717
    %v727 = vsel %vm228, %v705, 0
    %729 = vmatpush.msra.mxu0 0.0
    %730 = vmatpush.msra.mxu0 0.0
    %731 = vmatpush.msra.mxu0 0.0
    %732 = vmatpush.msra.mxu0 0.0
    %733 = vmatpush.msra.mxu0 0.0
    %734 = vmatpush.msra.mxu0 0.0
    %735 = vmatpush.msra.mxu0 0.0
    %736 = vmatpush.msra.mxu0 0.0
    %737 = vmatpush.msra.mxu0 0.0
    %738 = vmatpush.msra.mxu0 0.0
    %739 = vmatpush.msra.mxu0 0.0
    %740 = vmatpush.msra.mxu0 0.0
    %741 = vmatpush.msra.mxu0 0.0
    %742 = vmatpush.msra.mxu0 %v234
    %743 = vmatpush.msra.mxu0 %v41
    %744 = vmatpush.msra.mxu0 %v37
    %745 = vmatmul.f32.gmra.mxu0 %v727
    %v746 = vpop.f32.mrf.mxu0
    %v747 = vadd.f32 0.0, %v746
    %748 = vdwg.mxu0
    %749 = vmatpush.msra.mxu0 0.0
    %750 = vmatpush.msra.mxu0 0.0
    %751 = vmatpush.msra.mxu0 0.0
    %752 = vmatpush.msra.mxu0 0.0
    %753 = vmatpush.msra.mxu0 0.0
    %754 = vmatpush.msra.mxu0 0.0
    %755 = vmatpush.msra.mxu0 0.0
    %756 = vmatpush.msra.mxu0 0.0
    %757 = vmatpush.msra.mxu0 0.0
    %758 = vmatpush.msra.mxu0 0.0
    %759 = vmatpush.msra.mxu0 0.0
    %760 = vmatpush.msra.mxu0 0.0
    %761 = vmatpush.msra.mxu0 0.0
    %762 = vmatpush.msra.mxu0 %v237
    %763 = vmatpush.msra.mxu0 %v42
    %764 = vmatpush.msra.mxu0 %v38
    %765 = vmatmul.f32.gmra.mxu0 %v727
    %v766 = vpop.f32.mrf.mxu0
    %v767 = vadd.f32 0.0, %v766
    %768 = vdwg.mxu0
    %769 = vmatpush.msra.mxu0 0.0
    %770 = vmatpush.msra.mxu0 0.0
    %771 = vmatpush.msra.mxu0 0.0
    %772 = vmatpush.msra.mxu0 0.0
    %773 = vmatpush.msra.mxu0 0.0
    %774 = vmatpush.msra.mxu0 0.0
    %775 = vmatpush.msra.mxu0 0.0
    %776 = vmatpush.msra.mxu0 0.0
    %777 = vmatpush.msra.mxu0 0.0
    %778 = vmatpush.msra.mxu0 0.0
    %779 = vmatpush.msra.mxu0 0.0
    %780 = vmatpush.msra.mxu0 0.0
    %781 = vmatpush.msra.mxu0 0.0
    %782 = vmatpush.msra.mxu0 %v240
    %783 = vmatpush.msra.mxu0 %v43
    %784 = vmatpush.msra.mxu0 %v39
    %785 = vmatmul.f32.gmra.mxu0 %v727
    %v786 = vpop.f32.mrf.mxu0
    %v787 = vadd.f32 0.0, %v786
    %788 = vdwg.mxu0
    %789 = vmatpush.msra.mxu0 0.0
    %790 = vmatpush.msra.mxu0 0.0
    %791 = vmatpush.msra.mxu0 0.0
    %792 = vmatpush.msra.mxu0 0.0
    %793 = vmatpush.msra.mxu0 0.0
    %794 = vmatpush.msra.mxu0 0.0
    %795 = vmatpush.msra.mxu0 0.0
    %796 = vmatpush.msra.mxu0 0.0
    %797 = vmatpush.msra.mxu0 0.0
    %798 = vmatpush.msra.mxu0 0.0
    %799 = vmatpush.msra.mxu0 0.0
    %800 = vmatpush.msra.mxu0 0.0
    %801 = vmatpush.msra.mxu0 0.0
    %802 = vmatpush.msra.mxu0 %v243
    %803 = vmatpush.msra.mxu0 %v44
    %804 = vmatpush.msra.mxu0 %v40
    %805 = vmatmul.f32.gmra.mxu0 %v727
    %v806 = vpop.f32.mrf.mxu0
    %v807 = vadd.f32 0.0, %v806
    %808 = vdwg.mxu0
    %v809 = vadd.f32 %v722, %v747
    %v810 = vadd.f32 %v723, %v767
    %v811 = vadd.f32 %v724, %v787
    %v812 = vadd.f32 %v725, %v807
    %v813 = vtanh.pop %v809
    %v814 = vtanh.pop %v810
    %v815 = vtanh.pop %v811
    %v816 = vtanh.pop %v812
    %v817 = vmul.f32 %v813, 0.5
    %v818 = vadd.f32 %v817, 0.5
    %v819 = vmul.f32 %v814, 0.5
    %v820 = vadd.f32 %v819, 0.5
    %v821 = vmul.f32 %v816, 0.5
    %v822 = vadd.f32 %v821, 0.5
    %v823 = vmul.f32 %v820, %v703
    %v824 = vmul.f32 %v818, %v815
    %v825 = vadd.f32 %v823, %v824
    %v826 = vtanh.pop %v825
    %v827 = vmul.f32 %v822, %v826
    %v828 = vrot.slane %v137, 5
    %v829 = vrot.slane %v160, 5
    %v830 = vrot.slane %v183, 5
    %v831 = vrot.slane %v206, 5
    %v836 = vrot.slane %v140, 4
    %v837 = vrot.slane %v163, 4
    %v838 = vrot.slane %v186, 4
    %v839 = vrot.slane %v209, 4
    %v844 = vsel %vm223, %v828, %v836
    %v845 = vsel %vm223, %v829, %v837
    %v846 = vsel %vm223, %v830, %v838
    %v847 = vsel %vm223, %v831, %v839
    %v849 = vsel %vm228, %v827, 0
    %851 = vmatpush.msra.mxu0 0.0
    %852 = vmatpush.msra.mxu0 0.0
    %853 = vmatpush.msra.mxu0 0.0
    %854 = vmatpush.msra.mxu0 0.0
    %855 = vmatpush.msra.mxu0 0.0
    %856 = vmatpush.msra.mxu0 0.0
    %857 = vmatpush.msra.mxu0 0.0
    %858 = vmatpush.msra.mxu0 0.0
    %859 = vmatpush.msra.mxu0 0.0
    %860 = vmatpush.msra.mxu0 0.0
    %861 = vmatpush.msra.mxu0 0.0
    %862 = vmatpush.msra.mxu0 0.0
    %863 = vmatpush.msra.mxu0 0.0
    %864 = vmatpush.msra.mxu0 %v234
    %865 = vmatpush.msra.mxu0 %v41
    %866 = vmatpush.msra.mxu0 %v37
    %867 = vmatmul.f32.gmra.mxu0 %v849
    %v868 = vpop.f32.mrf.mxu0
    %v869 = vadd.f32 0.0, %v868
    %870 = vdwg.mxu0
    %871 = vmatpush.msra.mxu0 0.0
    %872 = vmatpush.msra.mxu0 0.0
    %873 = vmatpush.msra.mxu0 0.0
    %874 = vmatpush.msra.mxu0 0.0
    %875 = vmatpush.msra.mxu0 0.0
    %876 = vmatpush.msra.mxu0 0.0
    %877 = vmatpush.msra.mxu0 0.0
    %878 = vmatpush.msra.mxu0 0.0
    %879 = vmatpush.msra.mxu0 0.0
    %880 = vmatpush.msra.mxu0 0.0
    %881 = vmatpush.msra.mxu0 0.0
    %882 = vmatpush.msra.mxu0 0.0
    %883 = vmatpush.msra.mxu0 0.0
    %884 = vmatpush.msra.mxu0 %v237
    %885 = vmatpush.msra.mxu0 %v42
    %886 = vmatpush.msra.mxu0 %v38
    %887 = vmatmul.f32.gmra.mxu0 %v849
    %v888 = vpop.f32.mrf.mxu0
    %v889 = vadd.f32 0.0, %v888
    %890 = vdwg.mxu0
    %891 = vmatpush.msra.mxu0 0.0
    %892 = vmatpush.msra.mxu0 0.0
    %893 = vmatpush.msra.mxu0 0.0
    %894 = vmatpush.msra.mxu0 0.0
    %895 = vmatpush.msra.mxu0 0.0
    %896 = vmatpush.msra.mxu0 0.0
    %897 = vmatpush.msra.mxu0 0.0
    %898 = vmatpush.msra.mxu0 0.0
    %899 = vmatpush.msra.mxu0 0.0
    %900 = vmatpush.msra.mxu0 0.0
    %901 = vmatpush.msra.mxu0 0.0
    %902 = vmatpush.msra.mxu0 0.0
    %903 = vmatpush.msra.mxu0 0.0
    %904 = vmatpush.msra.mxu0 %v240
    %905 = vmatpush.msra.mxu0 %v43
    %906 = vmatpush.msra.mxu0 %v39
    %907 = vmatmul.f32.gmra.mxu0 %v849
    %v908 = vpop.f32.mrf.mxu0
    %v909 = vadd.f32 0.0, %v908
    %910 = vdwg.mxu0
    %911 = vmatpush.msra.mxu0 0.0
    %912 = vmatpush.msra.mxu0 0.0
    %913 = vmatpush.msra.mxu0 0.0
    %914 = vmatpush.msra.mxu0 0.0
    %915 = vmatpush.msra.mxu0 0.0
    %916 = vmatpush.msra.mxu0 0.0
    %917 = vmatpush.msra.mxu0 0.0
    %918 = vmatpush.msra.mxu0 0.0
    %919 = vmatpush.msra.mxu0 0.0
    %920 = vmatpush.msra.mxu0 0.0
    %921 = vmatpush.msra.mxu0 0.0
    %922 = vmatpush.msra.mxu0 0.0
    %923 = vmatpush.msra.mxu0 0.0
    %924 = vmatpush.msra.mxu0 %v243
    %925 = vmatpush.msra.mxu0 %v44
    %926 = vmatpush.msra.mxu0 %v40
    %927 = vmatmul.f32.gmra.mxu0 %v849
    %v928 = vpop.f32.mrf.mxu0
    %v929 = vadd.f32 0.0, %v928
    %930 = vdwg.mxu0
    %v931 = vadd.f32 %v844, %v869
    %v932 = vadd.f32 %v845, %v889
    %v933 = vadd.f32 %v846, %v909
    %v934 = vadd.f32 %v847, %v929
    %v935 = vtanh.pop %v931
    %v936 = vtanh.pop %v932
    %v937 = vtanh.pop %v933
    %v938 = vtanh.pop %v934
    %v939 = vmul.f32 %v935, 0.5
    %v940 = vadd.f32 %v939, 0.5
    %v941 = vmul.f32 %v936, 0.5
    %v942 = vadd.f32 %v941, 0.5
    %v943 = vmul.f32 %v938, 0.5
    %v944 = vadd.f32 %v943, 0.5
    %v945 = vmul.f32 %v942, %v825
    %v946 = vmul.f32 %v940, %v937
    %v947 = vadd.f32 %v945, %v946
    %v948 = vtanh.pop %v947
    %v949 = vmul.f32 %v944, %v948
    %v950 = vrot.slane %v137, 6
    %v951 = vrot.slane %v160, 6
    %v952 = vrot.slane %v183, 6
    %v953 = vrot.slane %v206, 6
    %v958 = vrot.slane %v140, 5
    %v959 = vrot.slane %v163, 5
    %v960 = vrot.slane %v186, 5
    %v961 = vrot.slane %v209, 5
    %v966 = vsel %vm223, %v950, %v958
    %v967 = vsel %vm223, %v951, %v959
    %v968 = vsel %vm223, %v952, %v960
    %v969 = vsel %vm223, %v953, %v961
    %v971 = vsel %vm228, %v949, 0
    %973 = vmatpush.msra.mxu0 0.0
    %974 = vmatpush.msra.mxu0 0.0
    %975 = vmatpush.msra.mxu0 0.0
    %976 = vmatpush.msra.mxu0 0.0
    %977 = vmatpush.msra.mxu0 0.0
    %978 = vmatpush.msra.mxu0 0.0
    %979 = vmatpush.msra.mxu0 0.0
    %980 = vmatpush.msra.mxu0 0.0
    %981 = vmatpush.msra.mxu0 0.0
    %982 = vmatpush.msra.mxu0 0.0
    %983 = vmatpush.msra.mxu0 0.0
    %984 = vmatpush.msra.mxu0 0.0
    %985 = vmatpush.msra.mxu0 0.0
    %986 = vmatpush.msra.mxu0 %v234
    %987 = vmatpush.msra.mxu0 %v41
    %988 = vmatpush.msra.mxu0 %v37
    %989 = vmatmul.f32.gmra.mxu0 %v971
    %v990 = vpop.f32.mrf.mxu0
    %v991 = vadd.f32 0.0, %v990
    %992 = vdwg.mxu0
    %993 = vmatpush.msra.mxu0 0.0
    %994 = vmatpush.msra.mxu0 0.0
    %995 = vmatpush.msra.mxu0 0.0
    %996 = vmatpush.msra.mxu0 0.0
    %997 = vmatpush.msra.mxu0 0.0
    %998 = vmatpush.msra.mxu0 0.0
    %999 = vmatpush.msra.mxu0 0.0
    %1000 = vmatpush.msra.mxu0 0.0
    %1001 = vmatpush.msra.mxu0 0.0
    %1002 = vmatpush.msra.mxu0 0.0
    %1003 = vmatpush.msra.mxu0 0.0
    %1004 = vmatpush.msra.mxu0 0.0
    %1005 = vmatpush.msra.mxu0 0.0
    %1006 = vmatpush.msra.mxu0 %v237
    %1007 = vmatpush.msra.mxu0 %v42
    %1008 = vmatpush.msra.mxu0 %v38
    %1009 = vmatmul.f32.gmra.mxu0 %v971
    %v1010 = vpop.f32.mrf.mxu0
    %v1011 = vadd.f32 0.0, %v1010
    %1012 = vdwg.mxu0
    %1013 = vmatpush.msra.mxu0 0.0
    %1014 = vmatpush.msra.mxu0 0.0
    %1015 = vmatpush.msra.mxu0 0.0
    %1016 = vmatpush.msra.mxu0 0.0
    %1017 = vmatpush.msra.mxu0 0.0
    %1018 = vmatpush.msra.mxu0 0.0
    %1019 = vmatpush.msra.mxu0 0.0
    %1020 = vmatpush.msra.mxu0 0.0
    %1021 = vmatpush.msra.mxu0 0.0
    %1022 = vmatpush.msra.mxu0 0.0
    %1023 = vmatpush.msra.mxu0 0.0
    %1024 = vmatpush.msra.mxu0 0.0
    %1025 = vmatpush.msra.mxu0 0.0
    %1026 = vmatpush.msra.mxu0 %v240
    %1027 = vmatpush.msra.mxu0 %v43
    %1028 = vmatpush.msra.mxu0 %v39
    %1029 = vmatmul.f32.gmra.mxu0 %v971
    %v1030 = vpop.f32.mrf.mxu0
    %v1031 = vadd.f32 0.0, %v1030
    %1032 = vdwg.mxu0
    %1033 = vmatpush.msra.mxu0 0.0
    %1034 = vmatpush.msra.mxu0 0.0
    %1035 = vmatpush.msra.mxu0 0.0
    %1036 = vmatpush.msra.mxu0 0.0
    %1037 = vmatpush.msra.mxu0 0.0
    %1038 = vmatpush.msra.mxu0 0.0
    %1039 = vmatpush.msra.mxu0 0.0
    %1040 = vmatpush.msra.mxu0 0.0
    %1041 = vmatpush.msra.mxu0 0.0
    %1042 = vmatpush.msra.mxu0 0.0
    %1043 = vmatpush.msra.mxu0 0.0
    %1044 = vmatpush.msra.mxu0 0.0
    %1045 = vmatpush.msra.mxu0 0.0
    %1046 = vmatpush.msra.mxu0 %v243
    %1047 = vmatpush.msra.mxu0 %v44
    %1048 = vmatpush.msra.mxu0 %v40
    %1049 = vmatmul.f32.gmra.mxu0 %v971
    %v1050 = vpop.f32.mrf.mxu0
    %v1051 = vadd.f32 0.0, %v1050
    %1052 = vdwg.mxu0
    %v1053 = vadd.f32 %v966, %v991
    %v1054 = vadd.f32 %v967, %v1011
    %v1055 = vadd.f32 %v968, %v1031
    %v1056 = vadd.f32 %v969, %v1051
    %v1057 = vtanh.pop %v1053
    %v1058 = vtanh.pop %v1054
    %v1059 = vtanh.pop %v1055
    %v1060 = vtanh.pop %v1056
    %v1061 = vmul.f32 %v1057, 0.5
    %v1062 = vadd.f32 %v1061, 0.5
    %v1063 = vmul.f32 %v1058, 0.5
    %v1064 = vadd.f32 %v1063, 0.5
    %v1065 = vmul.f32 %v1060, 0.5
    %v1066 = vadd.f32 %v1065, 0.5
    %v1067 = vmul.f32 %v1064, %v947
    %v1068 = vmul.f32 %v1062, %v1059
    %v1069 = vadd.f32 %v1067, %v1068
    %v1070 = vtanh.pop %v1069
    %v1071 = vmul.f32 %v1066, %v1070
    %v1072 = vrot.slane %v137, 7
    %v1073 = vrot.slane %v160, 7
    %v1074 = vrot.slane %v183, 7
    %v1075 = vrot.slane %v206, 7
    %v1080 = vrot.slane %v140, 6
    %v1081 = vrot.slane %v163, 6
    %v1082 = vrot.slane %v186, 6
    %v1083 = vrot.slane %v209, 6
    %v1088 = vsel %vm223, %v1072, %v1080
    %v1089 = vsel %vm223, %v1073, %v1081
    %v1090 = vsel %vm223, %v1074, %v1082
    %v1091 = vsel %vm223, %v1075, %v1083
    %v1093 = vsel %vm228, %v1071, 0
    %1095 = vmatpush.msra.mxu0 0.0
    %1096 = vmatpush.msra.mxu0 0.0
    %1097 = vmatpush.msra.mxu0 0.0
    %1098 = vmatpush.msra.mxu0 0.0
    %1099 = vmatpush.msra.mxu0 0.0
    %1100 = vmatpush.msra.mxu0 0.0
    %1101 = vmatpush.msra.mxu0 0.0
    %1102 = vmatpush.msra.mxu0 0.0
    %1103 = vmatpush.msra.mxu0 0.0
    %1104 = vmatpush.msra.mxu0 0.0
    %1105 = vmatpush.msra.mxu0 0.0
    %1106 = vmatpush.msra.mxu0 0.0
    %1107 = vmatpush.msra.mxu0 0.0
    %1108 = vmatpush.msra.mxu0 %v234
    %1109 = vmatpush.msra.mxu0 %v41
    %1110 = vmatpush.msra.mxu0 %v37
    %1111 = vmatmul.f32.gmra.mxu0 %v1093
    %v1112 = vpop.f32.mrf.mxu0
    %v1113 = vadd.f32 0.0, %v1112
    %1114 = vdwg.mxu0
    %1115 = vmatpush.msra.mxu0 0.0
    %1116 = vmatpush.msra.mxu0 0.0
    %1117 = vmatpush.msra.mxu0 0.0
    %1118 = vmatpush.msra.mxu0 0.0
    %1119 = vmatpush.msra.mxu0 0.0
    %1120 = vmatpush.msra.mxu0 0.0
    %1121 = vmatpush.msra.mxu0 0.0
    %1122 = vmatpush.msra.mxu0 0.0
    %1123 = vmatpush.msra.mxu0 0.0
    %1124 = vmatpush.msra.mxu0 0.0
    %1125 = vmatpush.msra.mxu0 0.0
    %1126 = vmatpush.msra.mxu0 0.0
    %1127 = vmatpush.msra.mxu0 0.0
    %1128 = vmatpush.msra.mxu0 %v237
    %1129 = vmatpush.msra.mxu0 %v42
    %1130 = vmatpush.msra.mxu0 %v38
    %1131 = vmatmul.f32.gmra.mxu0 %v1093
    %v1132 = vpop.f32.mrf.mxu0
    %v1133 = vadd.f32 0.0, %v1132
    %1134 = vdwg.mxu0
    %1135 = vmatpush.msra.mxu0 0.0
    %1136 = vmatpush.msra.mxu0 0.0
    %1137 = vmatpush.msra.mxu0 0.0
    %1138 = vmatpush.msra.mxu0 0.0
    %1139 = vmatpush.msra.mxu0 0.0
    %1140 = vmatpush.msra.mxu0 0.0
    %1141 = vmatpush.msra.mxu0 0.0
    %1142 = vmatpush.msra.mxu0 0.0
    %1143 = vmatpush.msra.mxu0 0.0
    %1144 = vmatpush.msra.mxu0 0.0
    %1145 = vmatpush.msra.mxu0 0.0
    %1146 = vmatpush.msra.mxu0 0.0
    %1147 = vmatpush.msra.mxu0 0.0
    %1148 = vmatpush.msra.mxu0 %v240
    %1149 = vmatpush.msra.mxu0 %v43
    %1150 = vmatpush.msra.mxu0 %v39
    %1151 = vmatmul.f32.gmra.mxu0 %v1093
    %v1152 = vpop.f32.mrf.mxu0
    %v1153 = vadd.f32 0.0, %v1152
    %1154 = vdwg.mxu0
    %1155 = vmatpush.msra.mxu0 0.0
    %1156 = vmatpush.msra.mxu0 0.0
    %1157 = vmatpush.msra.mxu0 0.0
    %1158 = vmatpush.msra.mxu0 0.0
    %1159 = vmatpush.msra.mxu0 0.0
    %1160 = vmatpush.msra.mxu0 0.0
    %1161 = vmatpush.msra.mxu0 0.0
    %1162 = vmatpush.msra.mxu0 0.0
    %1163 = vmatpush.msra.mxu0 0.0
    %1164 = vmatpush.msra.mxu0 0.0
    %1165 = vmatpush.msra.mxu0 0.0
    %1166 = vmatpush.msra.mxu0 0.0
    %1167 = vmatpush.msra.mxu0 0.0
    %1168 = vmatpush.msra.mxu0 %v243
    %1169 = vmatpush.msra.mxu0 %v44
    %1170 = vmatpush.msra.mxu0 %v40
    %1171 = vmatmul.f32.gmra.mxu0 %v1093
    %v1172 = vpop.f32.mrf.mxu0
    %v1173 = vadd.f32 0.0, %v1172
    %1174 = vdwg.mxu0
    %v1175 = vadd.f32 %v1088, %v1113
    %v1176 = vadd.f32 %v1089, %v1133
    %v1177 = vadd.f32 %v1090, %v1153
    %v1178 = vadd.f32 %v1091, %v1173
    %v1179 = vtanh.pop %v1175
    %v1180 = vtanh.pop %v1176
    %v1181 = vtanh.pop %v1177
    %v1182 = vtanh.pop %v1178
    %v1183 = vmul.f32 %v1179, 0.5
    %v1184 = vadd.f32 %v1183, 0.5
    %v1185 = vmul.f32 %v1180, 0.5
    %v1186 = vadd.f32 %v1185, 0.5
    %v1187 = vmul.f32 %v1182, 0.5
    %v1188 = vadd.f32 %v1187, 0.5
    %v1189 = vmul.f32 %v1186, %v1069
    %v1190 = vmul.f32 %v1184, %v1181
    %v1191 = vadd.f32 %v1189, %v1190
    %v1192 = vtanh.pop %v1191
    %v1193 = vmul.f32 %v1188, %v1192
    %v1195 = vsel %vm228, %v1193, 0
    %v1198 = vsel %vm232, %v51, 0
    %1200 = vmatpush.msra.mxu0 0.0
    %1201 = vmatpush.msra.mxu0 0.0
    %1202 = vmatpush.msra.mxu0 0.0
    %1203 = vmatpush.msra.mxu0 0.0
    %1204 = vmatpush.msra.mxu0 0.0
    %1205 = vmatpush.msra.mxu0 0.0
    %1206 = vmatpush.msra.mxu0 0.0
    %1207 = vmatpush.msra.mxu0 0.0
    %1208 = vmatpush.msra.mxu0 0.0
    %1209 = vmatpush.msra.mxu0 0.0
    %1210 = vmatpush.msra.mxu0 0.0
    %1211 = vmatpush.msra.mxu0 0.0
    %1212 = vmatpush.msra.mxu0 0.0
    %1213 = vmatpush.msra.mxu0 %v1198
    %1214 = vmatpush.msra.mxu0 %v50
    %1215 = vmatpush.msra.mxu0 %v49
    %1216 = vmatmul.f32.gmra.mxu0 %v1195
    %v1217 = vpop.f32.mrf.mxu0
    %v1218 = vadd.f32 %v32, %v1217
    %1219 = vdwg.mxu0
    %vm1220 = vcmask 9216
    %1221 = vst.msk [vmem:[#allocation5] sm:$0x3] %vm1220, %v1218
    // Predicated region
    $region14: #{tpu_custom_call.1} parent=1 // pred_check
      _
    $region15: #{tpu_custom_call.1} parent=1 // pred_check_branch
      %1223 = sbr.rel (0) target = $region17
    $region16: #{tpu_custom_call.1} parent=1 // pred_region
      %1225 = vsyncadd [#allocation4], 0
      %s1227 = sshll.u32 [#allocation5], 4
      %s1228 = int_to_ptr.vmem [resolvable:$true] %s1227
      %s1229 = sshll.u32 %s2, 4
      %s1230 = int_to_ptr.hbm [resolvable:$true] %s1229
      %1232 = dma.vmem_to_hbm [thread:$0]  %s1228, 32, %s1230, [#allocation4]
    $region17: #{tpu_custom_call.1} parent=1 // pred_fallthru
      _
    // Predicated region
    $region18: #{tpu_custom_call.1} parent=1 // pred_check
      _
    $region19: #{tpu_custom_call.1} parent=1 // pred_check_branch
      %1234 = sbr.rel (0) target = $region21
    $region20: #{tpu_custom_call.1} parent=1 // pred_region
      %1236 = dma.done [#allocation4], 32
    $region21: #{tpu_custom_call.1} parent=1 // pred_fallthru
      _
    %1237 = vsyncpa [#allocation3], 1
    %1238 = vsyncpa [#allocation4], 1

</llo_original>
